<compile_context>
chip_gen: v7x
topology: tpu7x:2x2x1
jax: 0.10.0
libtpu: 0.0.40
codegen_flags: <defaults>
</compile_context>

<pallas_src>
import math
import functools

import jax
import jax.numpy as jnp
from jax.experimental import pallas as pl
from jax.experimental.pallas import tpu as pltpu


def _round_up(x, m):
    return (x + m - 1) // m * m


def _sigmoid(x):
    # == jax.nn.sigmoid; single-EUP-op form (no divide), used identically in the
    # kernel, the weight prep and the reference so numerics line up exactly.
    return 0.5 * (jnp.tanh(0.5 * x) + 1.0)


def extnalunet_kernel(xT_ref, w_ref, o_ref, *, eps, layer_dims, row_offsets):
    """Fused forward pass of the whole ExtNALUNet for one batch tile.

    xT_ref : (Din0, tb)        activations, batch on the lane axis
    w_ref  : (sum_rows, 128)   all layers' block-diagonal weights stacked on
                               sublanes; layer l occupies rows
                               [row_offsets[l], row_offsets[l] + 5*Dout_l) and
                               lanes [0, 2*Din_l).
    o_ref  : (Dout_L, tb)
    """
    hT = xT_ref[...]                                            # (Din0, tb) f32

    # Layers have different shapes, so the layer loop is unrolled in Python.
    for (din, dout), roff in zip(layer_dims, row_offsets):
        # Block-diagonal weight  [[Wa;G;Gs;Gc], 0 ; 0, Wm]  applied to
        # concat([hT, log(|hT|+eps)])  ->  one fat MXU matmul per layer.
        rhs = jnp.concatenate([hT, jnp.log(jnp.abs(hT) + eps)], axis=0)  # (2*din, tb)
        w = w_ref[roff:roff + 5 * dout, :2 * din]               # (5*dout, 2*din) view
        zT = jnp.dot(w, rhs, preferred_element_type=jnp.float32)  # (5*dout, tb)

        # Sublane slices at multiples of dout (dout is a multiple of 8 here)
        # -> free views of zT's vregs, no lane shuffles.
        a = zT[0 * dout:1 * dout]
        g = _sigmoid(zT[1 * dout:2 * dout])
        gs = _sigmoid(zT[2 * dout:3 * dout])
        gc = _sigmoid(zT[3 * dout:4 * dout])
        m = jnp.exp(zT[4 * dout:5 * dout])                      # log-space path

        y = g * a + (1.0 - g) * m
        y = gs * jnp.sin(y) + (1.0 - gs) * y
        y = gc * jnp.cos(y) + (1.0 - gc) * y
        hT = y                                                  # (dout, tb)

    o_ref[...] = hT.astype(o_ref.dtype)


def _prep_weight_slab(layer_params, lane_pad):
    """Pack every layer's block-diagonal weight into one (rows, lane_pad) slab.

    PyTorch (out, in) layout is used directly as the matmul LHS (no transpose).
    Returns (slab, row_offsets, layer_dims).
    """
    blocks, row_offsets, layer_dims = [], [], []
    off = 0
    for p in layer_params:
        W_ha = jnp.asarray(p["W_ha"], jnp.float32)
        dout, din = int(W_ha.shape[0]), int(W_ha.shape[1])
        Wa = jnp.tanh(W_ha) * _sigmoid(jnp.asarray(p["M_ha"], jnp.float32))
        Wm = (jnp.tanh(jnp.asarray(p["W_hm"], jnp.float32)) *
              _sigmoid(jnp.asarray(p["M_hm"], jnp.float32)))
        wcat = jnp.concatenate(
            [Wa,
             jnp.asarray(p["G"], jnp.float32),
             jnp.asarray(p["Gs"], jnp.float32),
             jnp.asarray(p["Gc"], jnp.float32)], axis=0)        # (4*dout, din)

        wbig = jnp.zeros((5 * dout, 2 * din), jnp.float32)
        wbig = wbig.at[:4 * dout, :din].set(wcat)               # acts on hT
        wbig = wbig.at[4 * dout:, din:].set(Wm)                 # acts on log(|hT|+eps)

        rows_pad = _round_up(5 * dout, 8)
        blk = jnp.zeros((rows_pad, lane_pad), jnp.float32)
        blk = blk.at[:5 * dout, :2 * din].set(wbig)

        blocks.append(blk)
        row_offsets.append(off)
        layer_dims.append((din, dout))
        off += rows_pad
    return jnp.concatenate(blocks, axis=0), tuple(row_offsets), tuple(layer_dims)


def extnalunet_forward(x, layer_params, *, eps=1e-10, tb=128):
    """Run the whole ExtNALUNet as one fused Pallas kernel.

    x: (B, Din0) float32; layer_params: list of dicts of 7 PyTorch-layout weights.
    tb: batch tile (lane axis), multiple of 128.  128 -> >=2 grid steps at B>=256
        (feeds both v7x TensorCores); 256 -> single step on v5e/v6e.
    """
    x = jnp.asarray(x, jnp.float32)
    B, Din0 = x.shape
    dins = [int(jnp.shape(p["W_ha"])[1]) for p in layer_params]
    douts = [int(jnp.shape(p["W_ha"])[0]) for p in layer_params]
    assert dins[0] == Din0, "input feature dim mismatch"
    dout_final = douts[-1]

    # Batch lives on the 128-wide lane axis: pad up to a multiple of tb.
    # Pad rows use 1.0 so the log path stays finite (log(1+eps) ~ 0) in the
    # throw-away rows; they are sliced off at the end.
    tb = max(128, _round_up(tb, 128))
    bp = _round_up(max(B, tb), tb)
    if bp != B:
        x = jnp.pad(x, ((0, bp - B), (0, 0)), constant_values=1.0)
    xT = x.T                                  # (Din0, bp): batch on lanes

    # Precompute effective weights + block-diagonal fusion + single slab.
    lane_pad = _round_up(max(2 * d for d in dins), 128)
    slab, row_offsets, layer_dims = _prep_weight_slab(layer_params, lane_pad)

    # Whole-net-resident weights: cheap at these widths; guard against wide
    # structs blowing the 32 MiB scoped VMEM (64 MiB physical on v7x).
    vmem_est = 2 * 4 * (slab.size + (Din0 + dout_final) * tb)   # double-buffered
    assert vmem_est < 24 * 1024 * 1024, (
        "weights too large for whole-net VMEM residency")
    # TODO(synk): add per-layer K/N tiling fallback for struct widths in the thousands.

    grid = (bp // tb,)
    out_T = pl.pallas_call(
        functools.partial(extnalunet_kernel, eps=eps,
                          layer_dims=layer_dims, row_offsets=row_offsets),
        out_shape=jax.ShapeDtypeStruct((dout_final, bp), jnp.float32),
        grid_spec=pltpu.PrefetchScalarGridSpec(
            num_scalar_prefetch=0,
            grid=grid,
            in_specs=[
                pl.BlockSpec((Din0, tb), lambda i: (0, i)),
                pl.BlockSpec(tuple(int(d) for d in slab.shape), lambda i: (0, 0)),
            ],
            out_specs=pl.BlockSpec((dout_final, tb), lambda i: (0, i)),
        ),
        compiler_params=pltpu.CompilerParams(
            dimension_semantics=("parallel",),
            vmem_limit_bytes=32 * 1024 * 1024,
        ),
    )(xT, slab)
    return out_T.T[:B]                        # back to (B, Dout_final)


def init_extnalu_params(key, in_features, out_features):
    """kaiming_uniform_(a=sqrt(5)) equivalent: U(-1/sqrt(fan_in), 1/sqrt(fan_in))."""
    names = ("W_ha", "M_ha", "W_hm", "M_hm", "G", "Gs", "Gc")
    bound = 1.0 / math.sqrt(in_features)
    keys = jax.random.split(key, len(names))
    return {
        n: jax.random.uniform(k, (out_features, in_features),
                              dtype=jnp.float32, minval=-bound, maxval=bound)
        for n, k in zip(names, keys)
    }


def init_extnalunet_params(key, in_features, struct, out_features):
    dims = [in_features] + list(struct) + [out_features]
    keys = jax.random.split(key, len(dims) - 1)
    return [init_extnalu_params(k, dims[i], dims[i + 1])
            for i, k in enumerate(keys)]


# Pure-JAX reference (mirrors the PyTorch forward) for sanity checking.
def _extnalu_ref(x, p, eps=1e-10):
    hp = jax.lax.Precision.HIGHEST
    Wa = jnp.tanh(p["W_ha"]) * _sigmoid(p["M_ha"])
    Wm = jnp.tanh(p["W_hm"]) * _sigmoid(p["M_hm"])
    g = _sigmoid(jnp.dot(x, p["G"].T, precision=hp))
    gs = _sigmoid(jnp.dot(x, p["Gs"].T, precision=hp))
    gc = _sigmoid(jnp.dot(x, p["Gc"].T, precision=hp))
    a = jnp.dot(x, Wa.T, precision=hp)
    m = jnp.exp(jnp.dot(jnp.log(jnp.abs(x) + eps), Wm.T, precision=hp))
    y = g * a + (1.0 - g) * m
    y = gs * jnp.sin(y) + (1.0 - gs) * y
    y = gc * jnp.cos(y) + (1.0 - gc) * y
    return y


if __name__ == "__main__":
    key = jax.random.PRNGKey(0)
    k_x, k_p = jax.random.split(key)

    batch = 256            # -> tb=128, grid=(2,), both v7x TensorCores busy
    in_features = 16
    struct = [32, 32]
    out_features = 8

    x = jax.random.normal(k_x, (batch, in_features), dtype=jnp.float32)
    layer_params = init_extnalunet_params(k_p, in_features, struct, out_features)

    y = extnalunet_forward(x, layer_params)
    y = jax.block_until_ready(y)
    assert y.shape == (batch, out_features)

    # Cross-check against the pure-JAX reference of the PyTorch forward.
    # (Tolerance accounts for MXU vs XLA f32 summation-order differences being
    #  amplified through the exp() of the log-space multiplicative path.)
    y_ref = x
    for p in layer_params:
        y_ref = _extnalu_ref(y_ref, p)
    assert jnp.allclose(y, y_ref, atol=1e-4, rtol=1e-4), \
        float(jnp.max(jnp.abs(y - y_ref)))

    print("KERNEL_OK")
</pallas_src>

<mosaic_0001>
module attributes {stable_mosaic.version = 11 : i64} {
  func.func @extnalunet_kernel(%arg0: i32, %arg1: memref<16x128xf32, #tpu.memory_space<vmem>>, %arg2: memref<360x128xf32, #tpu.memory_space<vmem>>, %arg3: memref<8x128xf32, #tpu.memory_space<vmem>>) attributes {dimension_semantics = [#tpu.dimension_semantics<parallel>], iteration_bounds = array<i64: 2>, scalar_prefetch = 0 : i64, scratch_operands = 0 : i64, tpu.core_type = #tpu.core_type<tc>, window_params = [{transform_indices = @transform_0, window_bounds = array<i64: 16, 128>}, {pipeline_mode = #tpu.pipeline_mode<synchronous>, transform_indices = @transform_1, window_bounds = array<i64: 360, 128>}, {transform_indices = @transform_2, window_bounds = array<i64: 8, 128>}]} {
    %c0 = arith.constant 0 : index
    %c0_0 = arith.constant 0 : index
    %0 = vector.load %arg1[%c0, %c0_0] : memref<16x128xf32, #tpu.memory_space<vmem>>, vector<16x128xf32>
    %1 = math.absf %0 : vector<16x128xf32>
    %cst = arith.constant 1.000000e-10 : f32
    %2 = vector.broadcast %cst : f32 to vector<16x128xf32>
    %3 = arith.addf %1, %2 : vector<16x128xf32>
    %4 = math.log %3 : vector<16x128xf32>
    %5 = tpu.concatenate %0, %4 in 0 : vector<16x128xf32>, vector<16x128xf32> -> vector<32x128xf32>
    %c0_1 = arith.constant 0 : index
    %c0_2 = arith.constant 0 : index
    %6 = vector.load %arg2[%c0_1, %c0_2] : memref<360x128xf32, #tpu.memory_space<vmem>>, vector<160x32xf32>
    %cst_3 = arith.constant dense<0.000000e+00> : vector<160x128xf32>
    %7 = tpu.matmul %6, %5, %cst_3 {dimension_numbers = #tpu.dot_dimension_numbers<[1], [0], [0], [1], [0, 0, 1, 1], [], []>} : vector<160x32xf32>, vector<32x128xf32>, vector<160x128xf32> -> vector<160x128xf32>
    %8 = vector.extract_strided_slice %7 {offsets = [0, 0], sizes = [32, 128], strides = [1, 1]} : vector<160x128xf32> to vector<32x128xf32>
    %9 = vector.extract_strided_slice %7 {offsets = [32, 0], sizes = [32, 128], strides = [1, 1]} : vector<160x128xf32> to vector<32x128xf32>
    %cst_4 = arith.constant 5.000000e-01 : f32
    %10 = vector.broadcast %cst_4 : f32 to vector<32x128xf32>
    %11 = arith.mulf %10, %9 : vector<32x128xf32>
    %12 = math.tanh %11 : vector<32x128xf32>
    %cst_5 = arith.constant 1.000000e+00 : f32
    %13 = vector.broadcast %cst_5 : f32 to vector<32x128xf32>
    %14 = arith.addf %12, %13 : vector<32x128xf32>
    %cst_6 = arith.constant 5.000000e-01 : f32
    %15 = vector.broadcast %cst_6 : f32 to vector<32x128xf32>
    %16 = arith.mulf %15, %14 : vector<32x128xf32>
    %17 = vector.extract_strided_slice %7 {offsets = [64, 0], sizes = [32, 128], strides = [1, 1]} : vector<160x128xf32> to vector<32x128xf32>
    %cst_7 = arith.constant 5.000000e-01 : f32
    %18 = vector.broadcast %cst_7 : f32 to vector<32x128xf32>
    %19 = arith.mulf %18, %17 : vector<32x128xf32>
    %20 = math.tanh %19 : vector<32x128xf32>
    %cst_8 = arith.constant 1.000000e+00 : f32
    %21 = vector.broadcast %cst_8 : f32 to vector<32x128xf32>
    %22 = arith.addf %20, %21 : vector<32x128xf32>
    %cst_9 = arith.constant 5.000000e-01 : f32
    %23 = vector.broadcast %cst_9 : f32 to vector<32x128xf32>
    %24 = arith.mulf %23, %22 : vector<32x128xf32>
    %25 = vector.extract_strided_slice %7 {offsets = [96, 0], sizes = [32, 128], strides = [1, 1]} : vector<160x128xf32> to vector<32x128xf32>
    %cst_10 = arith.constant 5.000000e-01 : f32
    %26 = vector.broadcast %cst_10 : f32 to vector<32x128xf32>
    %27 = arith.mulf %26, %25 : vector<32x128xf32>
    %28 = math.tanh %27 : vector<32x128xf32>
    %cst_11 = arith.constant 1.000000e+00 : f32
    %29 = vector.broadcast %cst_11 : f32 to vector<32x128xf32>
    %30 = arith.addf %28, %29 : vector<32x128xf32>
    %cst_12 = arith.constant 5.000000e-01 : f32
    %31 = vector.broadcast %cst_12 : f32 to vector<32x128xf32>
    %32 = arith.mulf %31, %30 : vector<32x128xf32>
    %33 = vector.extract_strided_slice %7 {offsets = [128, 0], sizes = [32, 128], strides = [1, 1]} : vector<160x128xf32> to vector<32x128xf32>
    %34 = math.exp %33 : vector<32x128xf32>
    %35 = arith.mulf %16, %8 : vector<32x128xf32>
    %cst_13 = arith.constant 1.000000e+00 : f32
    %36 = vector.broadcast %cst_13 : f32 to vector<32x128xf32>
    %37 = arith.subf %36, %16 : vector<32x128xf32>
    %38 = arith.mulf %37, %34 : vector<32x128xf32>
    %39 = arith.addf %35, %38 : vector<32x128xf32>
    %40 = math.sin %39 : vector<32x128xf32>
    %41 = arith.mulf %24, %40 : vector<32x128xf32>
    %cst_14 = arith.constant 1.000000e+00 : f32
    %42 = vector.broadcast %cst_14 : f32 to vector<32x128xf32>
    %43 = arith.subf %42, %24 : vector<32x128xf32>
    %44 = arith.mulf %43, %39 : vector<32x128xf32>
    %45 = arith.addf %41, %44 : vector<32x128xf32>
    %46 = math.cos %45 : vector<32x128xf32>
    %47 = arith.mulf %32, %46 : vector<32x128xf32>
    %cst_15 = arith.constant 1.000000e+00 : f32
    %48 = vector.broadcast %cst_15 : f32 to vector<32x128xf32>
    %49 = arith.subf %48, %32 : vector<32x128xf32>
    %50 = arith.mulf %49, %45 : vector<32x128xf32>
    %51 = arith.addf %47, %50 : vector<32x128xf32>
    %52 = math.absf %51 : vector<32x128xf32>
    %cst_16 = arith.constant 1.000000e-10 : f32
    %53 = vector.broadcast %cst_16 : f32 to vector<32x128xf32>
    %54 = arith.addf %52, %53 : vector<32x128xf32>
    %55 = math.log %54 : vector<32x128xf32>
    %56 = tpu.concatenate %51, %55 in 0 : vector<32x128xf32>, vector<32x128xf32> -> vector<64x128xf32>
    %c160 = arith.constant 160 : index
    %c0_17 = arith.constant 0 : index
    %57 = vector.load %arg2[%c160, %c0_17] : memref<360x128xf32, #tpu.memory_space<vmem>>, vector<160x64xf32>
    %cst_18 = arith.constant dense<0.000000e+00> : vector<160x128xf32>
    %58 = tpu.matmul %57, %56, %cst_18 {dimension_numbers = #tpu.dot_dimension_numbers<[1], [0], [0], [1], [0, 0, 1, 1], [], []>} : vector<160x64xf32>, vector<64x128xf32>, vector<160x128xf32> -> vector<160x128xf32>
    %59 = vector.extract_strided_slice %58 {offsets = [0, 0], sizes = [32, 128], strides = [1, 1]} : vector<160x128xf32> to vector<32x128xf32>
    %60 = vector.extract_strided_slice %58 {offsets = [32, 0], sizes = [32, 128], strides = [1, 1]} : vector<160x128xf32> to vector<32x128xf32>
    %cst_19 = arith.constant 5.000000e-01 : f32
    %61 = vector.broadcast %cst_19 : f32 to vector<32x128xf32>
    %62 = arith.mulf %61, %60 : vector<32x128xf32>
    %63 = math.tanh %62 : vector<32x128xf32>
    %cst_20 = arith.constant 1.000000e+00 : f32
    %64 = vector.broadcast %cst_20 : f32 to vector<32x128xf32>
    %65 = arith.addf %63, %64 : vector<32x128xf32>
    %cst_21 = arith.constant 5.000000e-01 : f32
    %66 = vector.broadcast %cst_21 : f32 to vector<32x128xf32>
    %67 = arith.mulf %66, %65 : vector<32x128xf32>
    %68 = vector.extract_strided_slice %58 {offsets = [64, 0], sizes = [32, 128], strides = [1, 1]} : vector<160x128xf32> to vector<32x128xf32>
    %cst_22 = arith.constant 5.000000e-01 : f32
    %69 = vector.broadcast %cst_22 : f32 to vector<32x128xf32>
    %70 = arith.mulf %69, %68 : vector<32x128xf32>
    %71 = math.tanh %70 : vector<32x128xf32>
    %cst_23 = arith.constant 1.000000e+00 : f32
    %72 = vector.broadcast %cst_23 : f32 to vector<32x128xf32>
    %73 = arith.addf %71, %72 : vector<32x128xf32>
    %cst_24 = arith.constant 5.000000e-01 : f32
    %74 = vector.broadcast %cst_24 : f32 to vector<32x128xf32>
    %75 = arith.mulf %74, %73 : vector<32x128xf32>
    %76 = vector.extract_strided_slice %58 {offsets = [96, 0], sizes = [32, 128], strides = [1, 1]} : vector<160x128xf32> to vector<32x128xf32>
    %cst_25 = arith.constant 5.000000e-01 : f32
    %77 = vector.broadcast %cst_25 : f32 to vector<32x128xf32>
    %78 = arith.mulf %77, %76 : vector<32x128xf32>
    %79 = math.tanh %78 : vector<32x128xf32>
    %cst_26 = arith.constant 1.000000e+00 : f32
    %80 = vector.broadcast %cst_26 : f32 to vector<32x128xf32>
    %81 = arith.addf %79, %80 : vector<32x128xf32>
    %cst_27 = arith.constant 5.000000e-01 : f32
    %82 = vector.broadcast %cst_27 : f32 to vector<32x128xf32>
    %83 = arith.mulf %82, %81 : vector<32x128xf32>
    %84 = vector.extract_strided_slice %58 {offsets = [128, 0], sizes = [32, 128], strides = [1, 1]} : vector<160x128xf32> to vector<32x128xf32>
    %85 = math.exp %84 : vector<32x128xf32>
    %86 = arith.mulf %67, %59 : vector<32x128xf32>
    %cst_28 = arith.constant 1.000000e+00 : f32
    %87 = vector.broadcast %cst_28 : f32 to vector<32x128xf32>
    %88 = arith.subf %87, %67 : vector<32x128xf32>
    %89 = arith.mulf %88, %85 : vector<32x128xf32>
    %90 = arith.addf %86, %89 : vector<32x128xf32>
    %91 = math.sin %90 : vector<32x128xf32>
    %92 = arith.mulf %75, %91 : vector<32x128xf32>
    %cst_29 = arith.constant 1.000000e+00 : f32
    %93 = vector.broadcast %cst_29 : f32 to vector<32x128xf32>
    %94 = arith.subf %93, %75 : vector<32x128xf32>
    %95 = arith.mulf %94, %90 : vector<32x128xf32>
    %96 = arith.addf %92, %95 : vector<32x128xf32>
    %97 = math.cos %96 : vector<32x128xf32>
    %98 = arith.mulf %83, %97 : vector<32x128xf32>
    %cst_30 = arith.constant 1.000000e+00 : f32
    %99 = vector.broadcast %cst_30 : f32 to vector<32x128xf32>
    %100 = arith.subf %99, %83 : vector<32x128xf32>
    %101 = arith.mulf %100, %96 : vector<32x128xf32>
    %102 = arith.addf %98, %101 : vector<32x128xf32>
    %103 = math.absf %102 : vector<32x128xf32>
    %cst_31 = arith.constant 1.000000e-10 : f32
    %104 = vector.broadcast %cst_31 : f32 to vector<32x128xf32>
    %105 = arith.addf %103, %104 : vector<32x128xf32>
    %106 = math.log %105 : vector<32x128xf32>
    %107 = tpu.concatenate %102, %106 in 0 : vector<32x128xf32>, vector<32x128xf32> -> vector<64x128xf32>
    %c320 = arith.constant 320 : index
    %c0_32 = arith.constant 0 : index
    %108 = vector.load %arg2[%c320, %c0_32] : memref<360x128xf32, #tpu.memory_space<vmem>>, vector<40x64xf32>
    %cst_33 = arith.constant dense<0.000000e+00> : vector<40x128xf32>
    %109 = tpu.matmul %108, %107, %cst_33 {dimension_numbers = #tpu.dot_dimension_numbers<[1], [0], [0], [1], [0, 0, 1, 1], [], []>} : vector<40x64xf32>, vector<64x128xf32>, vector<40x128xf32> -> vector<40x128xf32>
    %110 = vector.extract_strided_slice %109 {offsets = [0, 0], sizes = [8, 128], strides = [1, 1]} : vector<40x128xf32> to vector<8x128xf32>
    %111 = vector.extract_strided_slice %109 {offsets = [8, 0], sizes = [8, 128], strides = [1, 1]} : vector<40x128xf32> to vector<8x128xf32>
    %cst_34 = arith.constant 5.000000e-01 : f32
    %112 = vector.broadcast %cst_34 : f32 to vector<8x128xf32>
    %113 = arith.mulf %112, %111 : vector<8x128xf32>
    %114 = math.tanh %113 : vector<8x128xf32>
    %cst_35 = arith.constant 1.000000e+00 : f32
    %115 = vector.broadcast %cst_35 : f32 to vector<8x128xf32>
    %116 = arith.addf %114, %115 : vector<8x128xf32>
    %cst_36 = arith.constant 5.000000e-01 : f32
    %117 = vector.broadcast %cst_36 : f32 to vector<8x128xf32>
    %118 = arith.mulf %117, %116 : vector<8x128xf32>
    %119 = vector.extract_strided_slice %109 {offsets = [16, 0], sizes = [8, 128], strides = [1, 1]} : vector<40x128xf32> to vector<8x128xf32>
    %cst_37 = arith.constant 5.000000e-01 : f32
    %120 = vector.broadcast %cst_37 : f32 to vector<8x128xf32>
    %121 = arith.mulf %120, %119 : vector<8x128xf32>
    %122 = math.tanh %121 : vector<8x128xf32>
    %cst_38 = arith.constant 1.000000e+00 : f32
    %123 = vector.broadcast %cst_38 : f32 to vector<8x128xf32>
    %124 = arith.addf %122, %123 : vector<8x128xf32>
    %cst_39 = arith.constant 5.000000e-01 : f32
    %125 = vector.broadcast %cst_39 : f32 to vector<8x128xf32>
    %126 = arith.mulf %125, %124 : vector<8x128xf32>
    %127 = vector.extract_strided_slice %109 {offsets = [24, 0], sizes = [8, 128], strides = [1, 1]} : vector<40x128xf32> to vector<8x128xf32>
    %cst_40 = arith.constant 5.000000e-01 : f32
    %128 = vector.broadcast %cst_40 : f32 to vector<8x128xf32>
    %129 = arith.mulf %128, %127 : vector<8x128xf32>
    %130 = math.tanh %129 : vector<8x128xf32>
    %cst_41 = arith.constant 1.000000e+00 : f32
    %131 = vector.broadcast %cst_41 : f32 to vector<8x128xf32>
    %132 = arith.addf %130, %131 : vector<8x128xf32>
    %cst_42 = arith.constant 5.000000e-01 : f32
    %133 = vector.broadcast %cst_42 : f32 to vector<8x128xf32>
    %134 = arith.mulf %133, %132 : vector<8x128xf32>
    %135 = vector.extract_strided_slice %109 {offsets = [32, 0], sizes = [8, 128], strides = [1, 1]} : vector<40x128xf32> to vector<8x128xf32>
    %136 = math.exp %135 : vector<8x128xf32>
    %137 = arith.mulf %118, %110 : vector<8x128xf32>
    %cst_43 = arith.constant 1.000000e+00 : f32
    %138 = vector.broadcast %cst_43 : f32 to vector<8x128xf32>
    %139 = arith.subf %138, %118 : vector<8x128xf32>
    %140 = arith.mulf %139, %136 : vector<8x128xf32>
    %141 = arith.addf %137, %140 : vector<8x128xf32>
    %142 = math.sin %141 : vector<8x128xf32>
    %143 = arith.mulf %126, %142 : vector<8x128xf32>
    %cst_44 = arith.constant 1.000000e+00 : f32
    %144 = vector.broadcast %cst_44 : f32 to vector<8x128xf32>
    %145 = arith.subf %144, %126 : vector<8x128xf32>
    %146 = arith.mulf %145, %141 : vector<8x128xf32>
    %147 = arith.addf %143, %146 : vector<8x128xf32>
    %148 = math.cos %147 : vector<8x128xf32>
    %149 = arith.mulf %134, %148 : vector<8x128xf32>
    %cst_45 = arith.constant 1.000000e+00 : f32
    %150 = vector.broadcast %cst_45 : f32 to vector<8x128xf32>
    %151 = arith.subf %150, %134 : vector<8x128xf32>
    %152 = arith.mulf %151, %147 : vector<8x128xf32>
    %153 = arith.addf %149, %152 : vector<8x128xf32>
    %c0_46 = arith.constant 0 : index
    %c0_47 = arith.constant 0 : index
    %154 = vector.load %arg3[%c0_46, %c0_47] : memref<8x128xf32, #tpu.memory_space<vmem>>, vector<8x128xf32>
    tpu.vector_store %arg3[%c0_46, %c0_47], %153 {strides = array<i32>} : memref<8x128xf32, #tpu.memory_space<vmem>>, vector<8x128xf32>,
    return
  }
  func.func @transform_0(%arg0: i32) -> (i32, i32) {
    %c0_i32 = arith.constant 0 : i32
    %c0_i32_0 = arith.constant 0 : i32
    return %c0_i32, %arg0 : i32, i32
  }
  func.func @transform_1(%arg0: i32) -> (i32, i32) {
    %c0_i32 = arith.constant 0 : i32
    %c0_i32_0 = arith.constant 0 : i32
    %c0_i32_1 = arith.constant 0 : i32
    return %c0_i32, %c0_i32_0 : i32, i32
  }
  func.func @transform_2(%arg0: i32) -> (i32, i32) {
    %c0_i32 = arith.constant 0 : i32
    %c0_i32_0 = arith.constant 0 : i32
    return %c0_i32, %arg0 : i32, i32
  }
}

</mosaic_0001>

<llo_original>
// kernel: tpu_custom_call.1
$region0: #{tpu_custom_call.1}
  #allocation0 [shape = 'u32[]', space=smem, size = 0x4, offset = 0x4, fixed_abs, tag = 'smem constant byte address 0x4 - core index']
  #allocation1 [shape = 'u32[144,128]{1,0:T(1,128)}', space=vmem, size = 0x12000, scoped, tag = 'internal scratch']
  %s0 = inlined_call_operand.hbm [shape: f32[16,256], index: 0, kind: input, shape index: {}]
  %s1 = inlined_call_operand.hbm [shape: f32[360,128], index: 1, kind: input, shape index: {}]
  %s2 = inlined_call_operand.hbm [shape: f32[8,256], index: 2, kind: output, shape index: {}]
  %s3 = sld [smem:[#allocation0]]
  $region49: #{tpu_custom_call.1} parent=0
    _
  %s5 = ssub.s32 1, %s3
  %s6 = scalar_select 0, %s5, %s3
  $region1: #{tpu_custom_call.1} parent=0
    #allocation2 [shape = 'u8[16384]{0}', space=vmem, size = 0x4000, scoped, tag = 'input window, operand 0']
    #allocation3 [shape = 's32[2]{0}', space=sflag, size = 0x8, scoped, tag = 'scoped memory for tpu_custom_call.1']
    #allocation4 [shape = 's32[2]{0}', space=sflag, size = 0x8, scoped, tag = 'scoped memory for tpu_custom_call.1']
    #allocation5 [shape = 'u8[184320]{0}', space=vmem, size = 0x2d000, scoped, tag = 'input window, operand 1, single buffered']
    #allocation6 [shape = 's32[1]{0}', space=sflag, size = 0x4, scoped, tag = 'scoped memory for tpu_custom_call.1']
    #allocation7 [shape = 'u8[8192]{0}', space=vmem, size = 0x2000, scoped, tag = 'output window, operand 0']
    %7 = vsyncpa [#allocation3], 0
    %s8 = scalar_lea.sflag [#allocation3], 1
    %9 = vsyncpa %s8, 0
    %10 = vsyncpa [#allocation6], 0
    %11 = vsyncpa [#allocation4], 0
    %s12 = scalar_lea.sflag [#allocation4], 1
    %13 = vsyncpa %s12, 0
    loop: start=0, step=1, limit=4
    $region2: #{tpu_custom_call.1} parent=1 // loop_pre_header
      _
    $region3: #{tpu_custom_call.1} parent=1 // loop_header
      %s15 = sphi 0, %s19
      %p16 = scmp.ge.s32.totalorder %s15, 4
      %s25 = sphi 0, %s27
      %s28 = sphi 0, %s25
      %s29 = sphi 0, %s28
      %s45 = sphi 0, %s29
      %s49 = sphi 0, %s49
      %s51 = sphi 0, %s49
      %s52 = sphi 0, %s51
      %s66 = sphi 0, %s52
      %s72 = sphi 0, %s74
      %s75 = sphi 0, %s72
      %s76 = sphi 0, %s75
      %s92 = sphi 0, %s76
    $region4: #{tpu_custom_call.1} parent=1 // loop_header_branch
      %18 = sbr.rel (%p16) target = $region8
    $region5: #{tpu_custom_call.1} parent=1 // loop_body
      %s20 = ssub.s32 %s15, 1
      %s21 = ssub.s32 %s15, 2
      %s22 = sadd.s32 %s15, 1
      %s23 = ssub.s32 %s15, %s22
      %p24 = scmp.eq.s32.totalorder %s23, 0
      %s26 = sadd.s32 %s25, 1
      %s27 = scalar_select %p24, %s25, %s26
      %p30 = pneg %p24
      %p31 = scmp.eq.s32.totalorder %s15, 1
      %p32 = por %p30, %p31
      %p33 = scmp.ne.s32.totalorder %s25, %s28
      %p34 = scmp.eq.s32.totalorder %s15, 0
      %p35 = por %p33, %p34
      %p36 = scmp.ne.s32.totalorder %s25, %s28
      %p37 = scmp.eq.s32.totalorder %s20, 1
      %p38 = por %p36, %p37
      %p39 = scmp.ne.s32.totalorder %s28, %s29
      %p40 = scmp.eq.s32.totalorder %s20, 0
      %p41 = por %p39, %p40
      %p42 = scmp.ne.s32.totalorder %s28, %s29
      %p43 = scmp.eq.s32.totalorder %s21, 1
      %p44 = por %p42, %p43
      %p46 = scmp.ne.s32.totalorder %s29, %s45
      %p47 = scmp.eq.s32.totalorder %s21, 0
      %p48 = por %p46, %p47
      %s50 = sadd.s32 %s49, 1
      %p53 = scmp.eq.s32.totalorder %s15, 1
      %p54 = scmp.ne.s32.totalorder %s49, %s51
      %p55 = scmp.eq.s32.totalorder %s15, 0
      %p56 = por %p54, %p55
      %p57 = scmp.ne.s32.totalorder %s49, %s51
      %p58 = scmp.eq.s32.totalorder %s20, 1
      %p59 = por %p57, %p58
      %p60 = scmp.ne.s32.totalorder %s51, %s52
      %p61 = scmp.eq.s32.totalorder %s20, 0
      %p62 = por %p60, %p61
      %p63 = scmp.ne.s32.totalorder %s51, %s52
      %p64 = scmp.eq.s32.totalorder %s21, 1
      %p65 = por %p63, %p64
      %p67 = scmp.ne.s32.totalorder %s52, %s66
      %p68 = scmp.eq.s32.totalorder %s21, 0
      %p69 = por %p67, %p68
      %s70 = ssub.s32 %s15, %s22
      %p71 = scmp.eq.s32.totalorder %s70, 0
      %s73 = sadd.s32 %s72, 1
      %s74 = scalar_select %p71, %s72, %s73
      %p77 = pneg %p71
      %p78 = scmp.eq.s32.totalorder %s15, 1
      %p79 = por %p77, %p78
      %p80 = scmp.ne.s32.totalorder %s72, %s75
      %p81 = scmp.eq.s32.totalorder %s15, 0
      %p82 = por %p80, %p81
      %p83 = scmp.ne.s32.totalorder %s72, %s75
      %p84 = scmp.eq.s32.totalorder %s20, 1
      %p85 = por %p83, %p84
      %p86 = scmp.ne.s32.totalorder %s75, %s76
      %p87 = scmp.eq.s32.totalorder %s20, 0
      %p88 = por %p86, %p87
      %p89 = scmp.ne.s32.totalorder %s75, %s76
      %p90 = scmp.eq.s32.totalorder %s21, 1
      %p91 = por %p89, %p90
      %p93 = scmp.ne.s32.totalorder %s76, %s92
      %p94 = scmp.eq.s32.totalorder %s21, 0
      %p95 = por %p93, %p94
      %p96 = scmp.le.s32.totalorder 1, %s15
      %p97 = scmp.lt.s32.totalorder %s15, 3
      %p98 = pnand %p96, %p97
      %p99 = pneg %p98
      // Predicated region
      $region9: #{tpu_custom_call.1} parent=5 // pred_check
        _
      $region10: #{tpu_custom_call.1} parent=5 // pred_check_branch
        %101 = sbr.rel (%p98) target = $region12
      $region11: #{tpu_custom_call.1} parent=5 // pred_region
        %s102 = ssub.s32 %s15, 1
        // Predicated region
        $region13: #{tpu_custom_call.1} parent=11 // pred_check
          %p103 = pneg %p62
        $region14: #{tpu_custom_call.1} parent=11 // pred_check_branch
          %105 = sbr.rel (%p103) target = $region16
        $region15: #{tpu_custom_call.1} parent=11 // pred_region
          %s107 = ssub.s32 5760, 5760
          %108 = vsyncadd [#allocation6], %s107
          %s109 = sshll.u32 [#allocation5], 4
          %s110 = int_to_ptr.vmem [resolvable:$true] %s109
          %115 = dma.hbm_to_vmem [thread:$0]  %s1, 5760, %s110, [#allocation6], 128, 128, 8
        $region16: #{tpu_custom_call.1} parent=11 // pred_fallthru
          _
      $region12: #{tpu_custom_call.1} parent=5 // pred_fallthru
        _
      %p116 = scmp.lt.s32.totalorder %s15, 2
      // Predicated region
      $region17: #{tpu_custom_call.1} parent=5 // pred_check
        %p117 = pneg %p116
      $region18: #{tpu_custom_call.1} parent=5 // pred_check_branch
        %119 = sbr.rel (%p117) target = $region20
      $region19: #{tpu_custom_call.1} parent=5 // pred_region
        // Predicated region
        $region21: #{tpu_custom_call.1} parent=19 // pred_check
          %p120 = pneg %p35
        $region22: #{tpu_custom_call.1} parent=19 // pred_check_branch
          %122 = sbr.rel (%p120) target = $region24
        $region23: #{tpu_custom_call.1} parent=19 // pred_region
          %s123 = sand.u32 %s25, 1
          %s124 = scalar_lea.sflag [#allocation3], %s123
          %s125 = sand.u32 %s25, 1
          %s126 = smul.addr %s125, 16
          %s127 = scalar_lea.vmem [#allocation2], %s126
          %s129 = ssub.s32 256, 256
          %130 = vsyncadd %s124, %s129
          %s131 = smul.addr %s15, 128
          %s132 = scalar_lea.hbm %s0, %s131
          %s133 = sshll.u32 %s127, 4
          %s134 = int_to_ptr.vmem [resolvable:$true] %s133
          %139 = dma.hbm_to_vmem [thread:$0]  %s132, 256, %s134, %s124, 256, 128, 8
        $region24: #{tpu_custom_call.1} parent=19 // pred_fallthru
          _
      $region20: #{tpu_custom_call.1} parent=5 // pred_fallthru
        _
      %p140 = scmp.le.s32.totalorder 1, %s15
      %p141 = scmp.lt.s32.totalorder %s15, 3
      %p142 = pnand %p140, %p141
      %p143 = pneg %p142
      // Predicated region
      $region25: #{tpu_custom_call.1} parent=5 // pred_check
        _
      $region26: #{tpu_custom_call.1} parent=5 // pred_check_branch
        %145 = sbr.rel (%p142) target = $region28
      $region27: #{tpu_custom_call.1} parent=5 // pred_region
        %s146 = ssub.s32 %s15, 1
        %s147 = sand.u32 %s28, 1
        %s148 = scalar_lea.sflag [#allocation3], %s147
        %s149 = sand.u32 %s28, 1
        %s150 = smul.addr %s149, 16
        %s151 = scalar_lea.vmem [#allocation2], %s150
        // Predicated region
        $region29: #{tpu_custom_call.1} parent=27 // pred_check
          %p152 = pneg %p41
        $region30: #{tpu_custom_call.1} parent=27 // pred_check_branch
          %154 = sbr.rel (%p152) target = $region32
        $region31: #{tpu_custom_call.1} parent=27 // pred_region
          %155 = dma.done %s148, 256
        $region32: #{tpu_custom_call.1} parent=27 // pred_fallthru
          _
        // Predicated region
        $region33: #{tpu_custom_call.1} parent=27 // pred_check
          %p156 = pneg %p62
        $region34: #{tpu_custom_call.1} parent=27 // pred_check_branch
          %158 = sbr.rel (%p156) target = $region36
        $region35: #{tpu_custom_call.1} parent=27 // pred_region
          %159 = dma.done [#allocation6], 5760
        $region36: #{tpu_custom_call.1} parent=27 // pred_fallthru
          _
        %s160 = sand.u32 %s28, 1
        %s161 = scalar_lea.sflag [#allocation3], %s160
        %s162 = sand.u32 %s28, 1
        %s163 = smul.addr %s162, 16
        %s164 = scalar_lea.vmem [#allocation2], %s163
        %p165 = pneg %p41
        %p166 = pneg %p38
        %p167 = pneg %p62
        %p168 = pneg %p59
        %p169 = pneg %p88
        %p170 = pneg %p85
        %s171 = sand.u32 %s75, 1
        %s172 = scalar_lea.sflag [#allocation4], %s171
        %s173 = sand.u32 %s75, 1
        %s174 = smul.addr %s173, 8
        %s175 = scalar_lea.vmem [#allocation7], %s174
        %v176 = vld [vmem:[%s151] sm:$0xff]
        %v177 = vld [vmem:[%s151 + $0x8] sm:$0xff]
        %v178 = vand.u32 2147483647, %v176
        %v179 = vand.u32 2147483647, %v177
        %v180 = vadd.f32 %v178, 1e-10
        %v181 = vadd.f32 %v179, 1e-10
        %v182 = vlog2.pop %v180
        %v183 = vmul.f32 %v182, 0.6931472
        %v184 = vlog2.pop %v181
        %v185 = vmul.f32 %v184, 0.6931472
        %v186 = vld [vmem:[#allocation5] sm:$0xff]
        %v187 = vld [vmem:[#allocation5 + $0x8] sm:$0xff]
        %v188 = vld [vmem:[#allocation5 + $0x10] sm:$0xff]
        %v189 = vld [vmem:[#allocation5 + $0x18] sm:$0xff]
        %v190 = vld [vmem:[#allocation5 + $0x20] sm:$0xff]
        %v191 = vld [vmem:[#allocation5 + $0x28] sm:$0xff]
        %v192 = vld [vmem:[#allocation5 + $0x30] sm:$0xff]
        %v193 = vld [vmem:[#allocation5 + $0x38] sm:$0xff]
        %v194 = vld [vmem:[#allocation5 + $0x40] sm:$0xff]
        %v195 = vld [vmem:[#allocation5 + $0x48] sm:$0xff]
        %v196 = vld [vmem:[#allocation5 + $0x50] sm:$0xff]
        %v197 = vld [vmem:[#allocation5 + $0x58] sm:$0xff]
        %v198 = vld [vmem:[#allocation5 + $0x60] sm:$0xff]
        %v199 = vld [vmem:[#allocation5 + $0x68] sm:$0xff]
        %v200 = vld [vmem:[#allocation5 + $0x70] sm:$0xff]
        %v201 = vld [vmem:[#allocation5 + $0x78] sm:$0xff]
        %v202 = vld [vmem:[#allocation5 + $0x80] sm:$0xff]
        %v203 = vld [vmem:[#allocation5 + $0x88] sm:$0xff]
        %v204 = vld [vmem:[#allocation5 + $0x90] sm:$0xff]
        %v205 = vld [vmem:[#allocation5 + $0x98] sm:$0xff]
        %vm206 = vcmask 261120
        %v208 = vsel %vm206, %v186, 0
        %v211 = vsel %vm206, %v187, 0
        %v214 = vsel %vm206, %v188, 0
        %v217 = vsel %vm206, %v189, 0
        %v220 = vsel %vm206, %v190, 0
        %v223 = vsel %vm206, %v191, 0
        %v226 = vsel %vm206, %v192, 0
        %v229 = vsel %vm206, %v193, 0
        %v232 = vsel %vm206, %v194, 0
        %v235 = vsel %vm206, %v195, 0
        %v238 = vsel %vm206, %v196, 0
        %v241 = vsel %vm206, %v197, 0
        %v244 = vsel %vm206, %v198, 0
        %v247 = vsel %vm206, %v199, 0
        %v250 = vsel %vm206, %v200, 0
        %v253 = vsel %vm206, %v201, 0
        %v256 = vsel %vm206, %v202, 0
        %v259 = vsel %vm206, %v203, 0
        %v262 = vsel %vm206, %v204, 0
        %v265 = vsel %vm206, %v205, 0
        %267 = vmatprep.subr.mxu0 0.0
        %268 = vmatpush1.msra.mxu0 %v176
        %269 = vmatprep.subr.mxu0 0.0
        %270 = vmatpush1.msra.mxu0 %v177
        %271 = vmatprep.subr.mxu0 0.0
        %272 = vmatpush1.msra.mxu0 %v183
        %273 = vmatprep.subr.mxu0 0.0
        %274 = vmatpush1.msra.mxu0 %v185
        %275 = vmatprep.subr.mxu0 0.0
        %276 = vmatpush1.msra.mxu0 0.0
        %277 = vmatprep.subr.mxu0 0.0
        %278 = vmatpush1.msra.mxu0 0.0
        %279 = vmatprep.subr.mxu0 0.0
        %280 = vmatpush1.msra.mxu0 0.0
        %281 = vmatprep.subr.mxu0 0.0
        %282 = vmatpush1.msra.mxu0 0.0
        %283 = vmatprep.subr.mxu0 0.0
        %284 = vmatpush1.msra.mxu0 0.0
        %285 = vmatprep.subr.mxu0 0.0
        %286 = vmatpush1.msra.mxu0 0.0
        %287 = vmatprep.subr.mxu0 0.0
        %288 = vmatpush1.msra.mxu0 0.0
        %289 = vmatprep.subr.mxu0 0.0
        %290 = vmatpush1.msra.mxu0 0.0
        %291 = vmatprep.subr.mxu0 0.0
        %292 = vmatpush1.msra.mxu0 0.0
        %293 = vmatprep.subr.mxu0 0.0
        %294 = vmatpush1.msra.mxu0 0.0
        %295 = vmatprep.subr.mxu0 0.0
        %296 = vmatpush1.msra.mxu0 0.0
        %297 = vmatprep.subr.mxu0 0.0
        %298 = vmatpush1.msra.mxu0 0.0
        %299 = vmatprep.subr.mxu0 0.0
        %300 = vmatpush1.msra.mxu0 0.0
        %301 = vmatprep.subr.mxu0 0.0
        %302 = vmatpush1.msra.mxu0 0.0
        %303 = vmatprep.subr.mxu0 0.0
        %304 = vmatpush1.msra.mxu0 0.0
        %305 = vmatprep.subr.mxu0 0.0
        %306 = vmatpush1.msra.mxu0 0.0
        %307 = vmatprep.subr.mxu0 0.0
        %308 = vmatpush1.msra.mxu0 0.0
        %309 = vmatprep.subr.mxu0 0.0
        %310 = vmatpush1.msra.mxu0 0.0
        %311 = vmatprep.subr.mxu0 0.0
        %312 = vmatpush1.msra.mxu0 0.0
        %313 = vmatprep.subr.mxu0 0.0
        %314 = vmatpush1.msra.mxu0 0.0
        %315 = vmatprep.subr.mxu0 0.0
        %316 = vmatpush1.msra.mxu0 0.0
        %317 = vmatprep.subr.mxu0 0.0
        %318 = vmatpush1.msra.mxu0 0.0
        %319 = vmatprep.subr.mxu0 0.0
        %320 = vmatpush1.msra.mxu0 0.0
        %321 = vmatprep.subr.mxu0 0.0
        %322 = vmatpush1.msra.mxu0 0.0
        %323 = vmatprep.subr.mxu0 0.0
        %324 = vmatpush1.msra.mxu0 0.0
        %325 = vmatprep.subr.mxu0 0.0
        %326 = vmatpush1.msra.mxu0 0.0
        %327 = vmatprep.subr.mxu0 0.0
        %328 = vmatpush1.msra.mxu0 0.0
        %329 = vmatprep.subr.mxu0 0.0
        %330 = vmatpush1.msra.mxu0 0.0
        %331 = vmatprep.mubr.f32.mxu0 0.0
        %332 = vmatmul.mubr.f32.gmra.mrb[0].mxu0 %v208
        %v333 = vpop.f32.mrb[0].mxu0
        %v334 = vadd.f32 0.0, %v333
        %v335 = vpop.f32.mrb[0].mxu0
        %336 = vmatprep.mubr.f32.mxu0 0.0
        %337 = vmatmul.mubr.f32.gmra.mrb[0].mxu0 %v211
        %v338 = vpop.f32.mrb[0].mxu0
        %v339 = vadd.f32 0.0, %v338
        %v340 = vpop.f32.mrb[0].mxu0
        %341 = vmatprep.mubr.f32.mxu0 0.0
        %342 = vmatmul.mubr.f32.gmra.mrb[0].mxu0 %v214
        %v343 = vpop.f32.mrb[0].mxu0
        %v344 = vadd.f32 0.0, %v343
        %v345 = vpop.f32.mrb[0].mxu0
        %346 = vmatprep.mubr.f32.mxu0 0.0
        %347 = vmatmul.mubr.f32.gmra.mrb[0].mxu0 %v217
        %v348 = vpop.f32.mrb[0].mxu0
        %v349 = vadd.f32 0.0, %v348
        %v350 = vpop.f32.mrb[0].mxu0
        %351 = vmatprep.mubr.f32.mxu0 0.0
        %352 = vmatmul.mubr.f32.gmra.mrb[0].mxu0 %v220
        %v353 = vpop.f32.mrb[0].mxu0
        %v354 = vadd.f32 0.0, %v353
        %v355 = vpop.f32.mrb[0].mxu0
        %356 = vmatprep.mubr.f32.mxu0 0.0
        %357 = vmatmul.mubr.f32.gmra.mrb[0].mxu0 %v223
        %v358 = vpop.f32.mrb[0].mxu0
        %v359 = vadd.f32 0.0, %v358
        %v360 = vpop.f32.mrb[0].mxu0
        %361 = vmatprep.mubr.f32.mxu0 0.0
        %362 = vmatmul.mubr.f32.gmra.mrb[0].mxu0 %v226
        %v363 = vpop.f32.mrb[0].mxu0
        %v364 = vadd.f32 0.0, %v363
        %v365 = vpop.f32.mrb[0].mxu0
        %366 = vmatprep.mubr.f32.mxu0 0.0
        %367 = vmatmul.mubr.f32.gmra.mrb[0].mxu0 %v229
        %v368 = vpop.f32.mrb[0].mxu0
        %v369 = vadd.f32 0.0, %v368
        %v370 = vpop.f32.mrb[0].mxu0
        %371 = vmatprep.mubr.f32.mxu0 0.0
        %372 = vmatmul.mubr.f32.gmra.mrb[0].mxu0 %v232
        %v373 = vpop.f32.mrb[0].mxu0
        %v374 = vadd.f32 0.0, %v373
        %v375 = vpop.f32.mrb[0].mxu0
        %376 = vmatprep.mubr.f32.mxu0 0.0
        %377 = vmatmul.mubr.f32.gmra.mrb[0].mxu0 %v235
        %v378 = vpop.f32.mrb[0].mxu0
        %v379 = vadd.f32 0.0, %v378
        %v380 = vpop.f32.mrb[0].mxu0
        %381 = vmatprep.mubr.f32.mxu0 0.0
        %382 = vmatmul.mubr.f32.gmra.mrb[0].mxu0 %v238
        %v383 = vpop.f32.mrb[0].mxu0
        %v384 = vadd.f32 0.0, %v383
        %v385 = vpop.f32.mrb[0].mxu0
        %386 = vmatprep.mubr.f32.mxu0 0.0
        %387 = vmatmul.mubr.f32.gmra.mrb[0].mxu0 %v241
        %v388 = vpop.f32.mrb[0].mxu0
        %v389 = vadd.f32 0.0, %v388
        %v390 = vpop.f32.mrb[0].mxu0
        %391 = vmatprep.mubr.f32.mxu0 0.0
        %392 = vmatmul.mubr.f32.gmra.mrb[0].mxu0 %v244
        %v393 = vpop.f32.mrb[0].mxu0
        %v394 = vadd.f32 0.0, %v393
        %v395 = vpop.f32.mrb[0].mxu0
        %396 = vmatprep.mubr.f32.mxu0 0.0
        %397 = vmatmul.mubr.f32.gmra.mrb[0].mxu0 %v247
        %v398 = vpop.f32.mrb[0].mxu0
        %v399 = vadd.f32 0.0, %v398
        %v400 = vpop.f32.mrb[0].mxu0
        %401 = vmatprep.mubr.f32.mxu0 0.0
        %402 = vmatmul.mubr.f32.gmra.mrb[0].mxu0 %v250
        %v403 = vpop.f32.mrb[0].mxu0
        %v404 = vadd.f32 0.0, %v403
        %v405 = vpop.f32.mrb[0].mxu0
        %406 = vmatprep.mubr.f32.mxu0 0.0
        %407 = vmatmul.mubr.f32.gmra.mrb[0].mxu0 %v253
        %v408 = vpop.f32.mrb[0].mxu0
        %v409 = vadd.f32 0.0, %v408
        %v410 = vpop.f32.mrb[0].mxu0
        %411 = vmatprep.mubr.f32.mxu0 0.0
        %412 = vmatmul.mubr.f32.gmra.mrb[0].mxu0 %v256
        %v413 = vpop.f32.mrb[0].mxu0
        %v414 = vadd.f32 0.0, %v413
        %v415 = vpop.f32.mrb[0].mxu0
        %416 = vmatprep.mubr.f32.mxu0 0.0
        %417 = vmatmul.mubr.f32.gmra.mrb[0].mxu0 %v259
        %v418 = vpop.f32.mrb[0].mxu0
        %v419 = vadd.f32 0.0, %v418
        %v420 = vpop.f32.mrb[0].mxu0
        %421 = vmatprep.mubr.f32.mxu0 0.0
        %422 = vmatmul.mubr.f32.gmra.mrb[0].mxu0 %v262
        %v423 = vpop.f32.mrb[0].mxu0
        %v424 = vadd.f32 0.0, %v423
        %v425 = vpop.f32.mrb[0].mxu0
        %426 = vmatprep.mubr.f32.mxu0 0.0
        %427 = vmatmul.mubr.f32.gmra.mrb[0].mxu0 %v265
        %v428 = vpop.f32.mrb[0].mxu0
        %v429 = vadd.f32 0.0, %v428
        %v430 = vpop.f32.mrb[0].mxu0
        %431 = vdwg.mxu0
        %v432 = vmul.f32 %v354, 0.5
        %v433 = vmul.f32 %v359, 0.5
        %v434 = vmul.f32 %v364, 0.5
        %v435 = vmul.f32 %v369, 0.5
        %v436 = vtanh.pop %v432
        %v437 = vtanh.pop %v433
        %v438 = vtanh.pop %v434
        %v439 = vtanh.pop %v435
        %v440 = vadd.f32 %v436, 1.0
        %v441 = vadd.f32 %v437, 1.0
        %v442 = vadd.f32 %v438, 1.0
        %v443 = vadd.f32 %v439, 1.0
        %v444 = vmul.f32 %v440, 0.5
        %v445 = vmul.f32 %v441, 0.5
        %v446 = vmul.f32 %v442, 0.5
        %v447 = vmul.f32 %v443, 0.5
        %v448 = vmul.f32 %v374, 0.5
        %v449 = vmul.f32 %v379, 0.5
        %v450 = vmul.f32 %v384, 0.5
        %v451 = vmul.f32 %v389, 0.5
        %v452 = vtanh.pop %v448
        %v453 = vtanh.pop %v449
        %v454 = vtanh.pop %v450
        %v455 = vtanh.pop %v451
        %v456 = vadd.f32 %v452, 1.0
        %v457 = vadd.f32 %v453, 1.0
        %v458 = vadd.f32 %v454, 1.0
        %v459 = vadd.f32 %v455, 1.0
        %v460 = vmul.f32 %v456, 0.5
        %v461 = vmul.f32 %v457, 0.5
        %v462 = vmul.f32 %v458, 0.5
        %v463 = vmul.f32 %v459, 0.5
        %v464 = vmul.f32 %v394, 0.5
        %v465 = vmul.f32 %v399, 0.5
        %v466 = vmul.f32 %v404, 0.5
        %v467 = vmul.f32 %v409, 0.5
        %v468 = vtanh.pop %v464
        %v469 = vtanh.pop %v465
        %v470 = vtanh.pop %v466
        %v471 = vtanh.pop %v467
        %v472 = vadd.f32 %v468, 1.0
        %v473 = vadd.f32 %v469, 1.0
        %v474 = vadd.f32 %v470, 1.0
        %v475 = vadd.f32 %v471, 1.0
        %v476 = vmul.f32 %v472, 0.5
        %v477 = vmul.f32 %v473, 0.5
        %v478 = vmul.f32 %v474, 0.5
        %v479 = vmul.f32 %v475, 0.5
        %v480 = vmul.f32 %v414, 1.442695
        %v481 = vpow.pop %v480
        %v482 = vmul.f32 %v419, 1.442695
        %v483 = vpow.pop %v482
        %v484 = vmul.f32 %v424, 1.442695
        %v485 = vpow.pop %v484
        %v486 = vmul.f32 %v429, 1.442695
        %v487 = vpow.pop %v486
        %v488 = vmul.f32 %v444, %v334
        %v489 = vmul.f32 %v445, %v339
        %v490 = vmul.f32 %v446, %v344
        %v491 = vmul.f32 %v447, %v349
        %v492 = vsub.f32 1.0, %v444
        %v493 = vsub.f32 1.0, %v445
        %v494 = vsub.f32 1.0, %v446
        %v495 = vsub.f32 1.0, %v447
        %v496 = vmul.f32 %v492, %v481
        %v497 = vmul.f32 %v493, %v483
        %v498 = vmul.f32 %v494, %v485
        %v499 = vmul.f32 %v495, %v487
        %v500 = vadd.f32 %v488, %v496
        %v501 = vadd.f32 %v489, %v497
        %v502 = vadd.f32 %v490, %v498
        %v503 = vadd.f32 %v491, %v499
        %v504 = vand.u32 2147483647, %v500
        %vm505 = vcmp.le.f32.partialorder %v504, 0.7853982
        %vm506 = vcmp.lt.s32.totalorder %v500, 0
        %v507 = vand.u32 %v500, 2139095040
        %v508 = vshrl.u32 %v507, 23
        %v509 = vsub.s32 %v508, 127
        %v510 = vand.u32 2147483647, %v500
        %v511 = vand.u32 %v510, 8388607
        %v512 = vor.u32 %v511, 8388608
        %v513 = vsub.s32 0, %v512
        %v514 = vadd.s32 %v509, 1
        %vm515 = vcmp.gt.s32.totalorder %v514, 0
        %v516 = vsel %vm515, %v514, 0
        %v517 = vshrl.u32 %v516, 5
        %v518 = vand.u32 %v516, 31
        %v519 = vsub.s32 32, %v518
        %v520 = vshrl.u32 683565275, %v519
        %v521 = vshll.u32 683565275, %v518
        %v522 = vshrl.u32 2475754826, %v519
        %v523 = vor.u32 %v521, %v522
        %v524 = vshll.u32 2475754826, %v518
        %v525 = vshrl.u32 2131351028, %v519
        %v526 = vor.u32 %v524, %v525
        %v527 = vshll.u32 2131351028, %v518
        %v528 = vshrl.u32 2102212464, %v519
        %v529 = vor.u32 %v527, %v528
        %v530 = vshll.u32 2102212464, %v518
        %v531 = vshrl.u32 920167782, %v519
        %v532 = vor.u32 %v530, %v531
        %v533 = vshll.u32 920167782, %v518
        %v534 = vshrl.u32 1326507024, %v519
        %v535 = vor.u32 %v533, %v534
        %vm536 = vcmp.lt.s32.totalorder %v517, 1
        %vm537 = vcmp.lt.s32.totalorder %v517, 2
        %vm538 = vcmp.lt.s32.totalorder %v517, 3
        %vm539 = vcmp.lt.s32.totalorder %v517, 4
        %v540 = vsel %vm536, %v520, %v523
        %v541 = vsel %vm539, %v529, 2102212464
        %v542 = vsel %vm538, %v526, %v541
        %v543 = vsel %vm537, %v540, %v542
        %v544 = vsel %vm536, %v523, %v526
        %v545 = vsel %vm539, %v532, 920167782
        %v546 = vsel %vm538, %v529, %v545
        %v547 = vsel %vm537, %v544, %v546
        %v548 = vsel %vm536, %v526, %v529
        %v549 = vsel %vm539, %v535, 1326507024
        %v550 = vsel %vm538, %v532, %v549
        %v551 = vsel %vm537, %v548, %v550
        %v552 = vshll.u32 %v512, 8
        %v553 = vmul.u32.u64.compose %v552, %v551
        %v554 = vextract.low.u32 %v553
        %v555 = vextract.high.u32 %v553
        %v556 = vmul.u32.u64.compose %v552, %v547
        %v557 = vextract.low.u32 %v556
        %v558 = vextract.high.u32 %v556
        %v559 = vmul.u32 %v552, %v543
        %v560 = vadd.s32 %v555, %v557
        %vm561 = vc.u32 %v555, %v557
        %v562 = vadd.s32 %v558, 1
        %v563 = vsel %vm561, %v562, %v558
        %v564 = vadd.s32 %v559, %v563
        %v565 = vadd.s32 %v564, 536870912
        %v566 = vshrl.u32 %v565, 30
        %v567 = vshll.u32 %v566, 30
        %v568 = vsub.s32 %v564, %v567
        %vm569 = vcmp.lt.s32.totalorder %v568, 0
        %v570 = vsub.s32 0, %v568
        %v571 = vsel %vm569, %v570, %v568
        %v572 = vclz %v571
        %v573 = vsub.s32 %v572, 2
        %vm574 = vcmp.gt.s32.totalorder 0, %v573
        %v575 = vsel %vm574, 0, %v573
        %v576 = vsub.s32 32, %v575
        %v577 = vshll.u32 %v568, %v575
        %v578 = vshrl.u32 %v560, %v576
        %v579 = vor.u32 %v577, %v578
        %v580 = vsub.s32 4294967266, %v575
        %v581 = vadd.s32 %v580, 127
        %v582 = vshll.u32 %v581, 23
        %v583 = vor.u32 4788187, %v582
        %v584 = vand.u32 2147483647, %v583
        %v586 = vcvt.s32.f32 %v579
        %v587 = vmul.f32 %v586, %v584
        %v588 = vxor.u32 %v587, 2147483648
        %v589 = vsel %vm506, %v588, %v587
        %v590 = vsub.s32 4, %v566
        %v591 = vsel %vm506, %v590, %v566
        %v592 = vsel %vm505, %v500, %v589
        %v593 = vsel %vm505, 0, %v591
        %v594 = vcosq.f32.pop %v592
        %v595 = vsinq.f32.pop %v592
        %vm596 = vweird.f32 %v500
        %v597 = vadd.s32 %v593, 3
        %v598 = vand.u32 %v597, 3
        %vm599 = vcmp.lt.s32.totalorder %v598, 2
        %vm600 = vcmp.eq.s32.totalorder %v598, 0
        %v601 = vxor.u32 %v595, 2147483648
        %v602 = vsel %vm600, %v594, %v601
        %vm603 = vcmp.eq.s32.totalorder %v598, 2
        %v604 = vxor.u32 %v594, 2147483648
        %v605 = vsel %vm603, %v604, %v595
        %v606 = vsel %vm599, %v602, %v605
        %v607 = vsel %vm596, nan, %v606
        %v608 = vand.u32 2147483647, %v501
        %vm609 = vcmp.le.f32.partialorder %v608, 0.7853982
        %vm610 = vcmp.lt.s32.totalorder %v501, 0
        %v611 = vand.u32 %v501, 2139095040
        %v612 = vshrl.u32 %v611, 23
        %v613 = vsub.s32 %v612, 127
        %v614 = vand.u32 2147483647, %v501
        %v615 = vand.u32 %v614, 8388607
        %v616 = vor.u32 %v615, 8388608
        %v617 = vsub.s32 0, %v616
        %v618 = vadd.s32 %v613, 1
        %vm619 = vcmp.gt.s32.totalorder %v618, 0
        %v620 = vsel %vm619, %v618, 0
        %v621 = vshrl.u32 %v620, 5
        %v622 = vand.u32 %v620, 31
        %v623 = vsub.s32 32, %v622
        %v624 = vshrl.u32 683565275, %v623
        %v625 = vshll.u32 683565275, %v622
        %v626 = vshrl.u32 2475754826, %v623
        %v627 = vor.u32 %v625, %v626
        %v628 = vshll.u32 2475754826, %v622
        %v629 = vshrl.u32 2131351028, %v623
        %v630 = vor.u32 %v628, %v629
        %v631 = vshll.u32 2131351028, %v622
        %v632 = vshrl.u32 2102212464, %v623
        %v633 = vor.u32 %v631, %v632
        %v634 = vshll.u32 2102212464, %v622
        %v635 = vshrl.u32 920167782, %v623
        %v636 = vor.u32 %v634, %v635
        %v637 = vshll.u32 920167782, %v622
        %v638 = vshrl.u32 1326507024, %v623
        %v639 = vor.u32 %v637, %v638
        %vm640 = vcmp.lt.s32.totalorder %v621, 1
        %vm641 = vcmp.lt.s32.totalorder %v621, 2
        %vm642 = vcmp.lt.s32.totalorder %v621, 3
        %vm643 = vcmp.lt.s32.totalorder %v621, 4
        %v644 = vsel %vm640, %v624, %v627
        %v645 = vsel %vm643, %v633, 2102212464
        %v646 = vsel %vm642, %v630, %v645
        %v647 = vsel %vm641, %v644, %v646
        %v648 = vsel %vm640, %v627, %v630
        %v649 = vsel %vm643, %v636, 920167782
        %v650 = vsel %vm642, %v633, %v649
        %v651 = vsel %vm641, %v648, %v650
        %v652 = vsel %vm640, %v630, %v633
        %v653 = vsel %vm643, %v639, 1326507024
        %v654 = vsel %vm642, %v636, %v653
        %v655 = vsel %vm641, %v652, %v654
        %v656 = vshll.u32 %v616, 8
        %v657 = vmul.u32.u64.compose %v656, %v655
        %v658 = vextract.low.u32 %v657
        %v659 = vextract.high.u32 %v657
        %v660 = vmul.u32.u64.compose %v656, %v651
        %v661 = vextract.low.u32 %v660
        %v662 = vextract.high.u32 %v660
        %v663 = vmul.u32 %v656, %v647
        %v664 = vadd.s32 %v659, %v661
        %vm665 = vc.u32 %v659, %v661
        %v666 = vadd.s32 %v662, 1
        %v667 = vsel %vm665, %v666, %v662
        %v668 = vadd.s32 %v663, %v667
        %v669 = vadd.s32 %v668, 536870912
        %v670 = vshrl.u32 %v669, 30
        %v671 = vshll.u32 %v670, 30
        %v672 = vsub.s32 %v668, %v671
        %vm673 = vcmp.lt.s32.totalorder %v672, 0
        %v674 = vsub.s32 0, %v672
        %v675 = vsel %vm673, %v674, %v672
        %v676 = vclz %v675
        %v677 = vsub.s32 %v676, 2
        %vm678 = vcmp.gt.s32.totalorder 0, %v677
        %v679 = vsel %vm678, 0, %v677
        %v680 = vsub.s32 32, %v679
        %v681 = vshll.u32 %v672, %v679
        %v682 = vshrl.u32 %v664, %v680
        %v683 = vor.u32 %v681, %v682
        %v684 = vsub.s32 4294967266, %v679
        %v685 = vadd.s32 %v684, 127
        %v686 = vshll.u32 %v685, 23
        %v687 = vor.u32 4788187, %v686
        %v688 = vand.u32 2147483647, %v687
        %v690 = vcvt.s32.f32 %v683
        %v691 = vmul.f32 %v690, %v688
        %v692 = vxor.u32 %v691, 2147483648
        %v693 = vsel %vm610, %v692, %v691
        %v694 = vsub.s32 4, %v670
        %v695 = vsel %vm610, %v694, %v670
        %v696 = vsel %vm609, %v501, %v693
        %v697 = vsel %vm609, 0, %v695
        %v698 = vcosq.f32.pop %v696
        %v699 = vsinq.f32.pop %v696
        %vm700 = vweird.f32 %v501
        %v701 = vadd.s32 %v697, 3
        %v702 = vand.u32 %v701, 3
        %vm703 = vcmp.lt.s32.totalorder %v702, 2
        %vm704 = vcmp.eq.s32.totalorder %v702, 0
        %v705 = vxor.u32 %v699, 2147483648
        %v706 = vsel %vm704, %v698, %v705
        %vm707 = vcmp.eq.s32.totalorder %v702, 2
        %v708 = vxor.u32 %v698, 2147483648
        %v709 = vsel %vm707, %v708, %v699
        %v710 = vsel %vm703, %v706, %v709
        %v711 = vsel %vm700, nan, %v710
        %v712 = vand.u32 2147483647, %v502
        %vm713 = vcmp.le.f32.partialorder %v712, 0.7853982
        %vm714 = vcmp.lt.s32.totalorder %v502, 0
        %v715 = vand.u32 %v502, 2139095040
        %v716 = vshrl.u32 %v715, 23
        %v717 = vsub.s32 %v716, 127
        %v718 = vand.u32 2147483647, %v502
        %v719 = vand.u32 %v718, 8388607
        %v720 = vor.u32 %v719, 8388608
        %v721 = vsub.s32 0, %v720
        %v722 = vadd.s32 %v717, 1
        %vm723 = vcmp.gt.s32.totalorder %v722, 0
        %v724 = vsel %vm723, %v722, 0
        %v725 = vshrl.u32 %v724, 5
        %v726 = vand.u32 %v724, 31
        %v727 = vsub.s32 32, %v726
        %v728 = vshrl.u32 683565275, %v727
        %v729 = vshll.u32 683565275, %v726
        %v730 = vshrl.u32 2475754826, %v727
        %v731 = vor.u32 %v729, %v730
        %v732 = vshll.u32 2475754826, %v726
        %v733 = vshrl.u32 2131351028, %v727
        %v734 = vor.u32 %v732, %v733
        %v735 = vshll.u32 2131351028, %v726
        %v736 = vshrl.u32 2102212464, %v727
        %v737 = vor.u32 %v735, %v736
        %v738 = vshll.u32 2102212464, %v726
        %v739 = vshrl.u32 920167782, %v727
        %v740 = vor.u32 %v738, %v739
        %v741 = vshll.u32 920167782, %v726
        %v742 = vshrl.u32 1326507024, %v727
        %v743 = vor.u32 %v741, %v742
        %vm744 = vcmp.lt.s32.totalorder %v725, 1
        %vm745 = vcmp.lt.s32.totalorder %v725, 2
        %vm746 = vcmp.lt.s32.totalorder %v725, 3
        %vm747 = vcmp.lt.s32.totalorder %v725, 4
        %v748 = vsel %vm744, %v728, %v731
        %v749 = vsel %vm747, %v737, 2102212464
        %v750 = vsel %vm746, %v734, %v749
        %v751 = vsel %vm745, %v748, %v750
        %v752 = vsel %vm744, %v731, %v734
        %v753 = vsel %vm747, %v740, 920167782
        %v754 = vsel %vm746, %v737, %v753
        %v755 = vsel %vm745, %v752, %v754
        %v756 = vsel %vm744, %v734, %v737
        %v757 = vsel %vm747, %v743, 1326507024
        %v758 = vsel %vm746, %v740, %v757
        %v759 = vsel %vm745, %v756, %v758
        %v760 = vshll.u32 %v720, 8
        %v761 = vmul.u32.u64.compose %v760, %v759
        %v762 = vextract.low.u32 %v761
        %v763 = vextract.high.u32 %v761
        %v764 = vmul.u32.u64.compose %v760, %v755
        %v765 = vextract.low.u32 %v764
        %v766 = vextract.high.u32 %v764
        %v767 = vmul.u32 %v760, %v751
        %v768 = vadd.s32 %v763, %v765
        %vm769 = vc.u32 %v763, %v765
        %v770 = vadd.s32 %v766, 1
        %v771 = vsel %vm769, %v770, %v766
        %v772 = vadd.s32 %v767, %v771
        %v773 = vadd.s32 %v772, 536870912
        %v774 = vshrl.u32 %v773, 30
        %v775 = vshll.u32 %v774, 30
        %v776 = vsub.s32 %v772, %v775
        %vm777 = vcmp.lt.s32.totalorder %v776, 0
        %v778 = vsub.s32 0, %v776
        %v779 = vsel %vm777, %v778, %v776
        %v780 = vclz %v779
        %v781 = vsub.s32 %v780, 2
        %vm782 = vcmp.gt.s32.totalorder 0, %v781
        %v783 = vsel %vm782, 0, %v781
        %v784 = vsub.s32 32, %v783
        %v785 = vshll.u32 %v776, %v783
        %v786 = vshrl.u32 %v768, %v784
        %v787 = vor.u32 %v785, %v786
        %v788 = vsub.s32 4294967266, %v783
        %v789 = vadd.s32 %v788, 127
        %v790 = vshll.u32 %v789, 23
        %v791 = vor.u32 4788187, %v790
        %v792 = vand.u32 2147483647, %v791
        %v794 = vcvt.s32.f32 %v787
        %v795 = vmul.f32 %v794, %v792
        %v796 = vxor.u32 %v795, 2147483648
        %v797 = vsel %vm714, %v796, %v795
        %v798 = vsub.s32 4, %v774
        %v799 = vsel %vm714, %v798, %v774
        %v800 = vsel %vm713, %v502, %v797
        %v801 = vsel %vm713, 0, %v799
        %v802 = vcosq.f32.pop %v800
        %v803 = vsinq.f32.pop %v800
        %vm804 = vweird.f32 %v502
        %v805 = vadd.s32 %v801, 3
        %v806 = vand.u32 %v805, 3
        %vm807 = vcmp.lt.s32.totalorder %v806, 2
        %vm808 = vcmp.eq.s32.totalorder %v806, 0
        %v809 = vxor.u32 %v803, 2147483648
        %v810 = vsel %vm808, %v802, %v809
        %vm811 = vcmp.eq.s32.totalorder %v806, 2
        %v812 = vxor.u32 %v802, 2147483648
        %v813 = vsel %vm811, %v812, %v803
        %v814 = vsel %vm807, %v810, %v813
        %v815 = vsel %vm804, nan, %v814
        %v816 = vand.u32 2147483647, %v503
        %vm817 = vcmp.le.f32.partialorder %v816, 0.7853982
        %vm818 = vcmp.lt.s32.totalorder %v503, 0
        %v819 = vand.u32 %v503, 2139095040
        %v820 = vshrl.u32 %v819, 23
        %v821 = vsub.s32 %v820, 127
        %v822 = vand.u32 2147483647, %v503
        %v823 = vand.u32 %v822, 8388607
        %v824 = vor.u32 %v823, 8388608
        %v825 = vsub.s32 0, %v824
        %v826 = vadd.s32 %v821, 1
        %vm827 = vcmp.gt.s32.totalorder %v826, 0
        %v828 = vsel %vm827, %v826, 0
        %v829 = vshrl.u32 %v828, 5
        %v830 = vand.u32 %v828, 31
        %v831 = vsub.s32 32, %v830
        %v832 = vshrl.u32 683565275, %v831
        %v833 = vshll.u32 683565275, %v830
        %v834 = vshrl.u32 2475754826, %v831
        %v835 = vor.u32 %v833, %v834
        %v836 = vshll.u32 2475754826, %v830
        %v837 = vshrl.u32 2131351028, %v831
        %v838 = vor.u32 %v836, %v837
        %v839 = vshll.u32 2131351028, %v830
        %v840 = vshrl.u32 2102212464, %v831
        %v841 = vor.u32 %v839, %v840
        %v842 = vshll.u32 2102212464, %v830
        %v843 = vshrl.u32 920167782, %v831
        %v844 = vor.u32 %v842, %v843
        %v845 = vshll.u32 920167782, %v830
        %v846 = vshrl.u32 1326507024, %v831
        %v847 = vor.u32 %v845, %v846
        %vm848 = vcmp.lt.s32.totalorder %v829, 1
        %vm849 = vcmp.lt.s32.totalorder %v829, 2
        %vm850 = vcmp.lt.s32.totalorder %v829, 3
        %vm851 = vcmp.lt.s32.totalorder %v829, 4
        %v852 = vsel %vm848, %v832, %v835
        %v853 = vsel %vm851, %v841, 2102212464
        %v854 = vsel %vm850, %v838, %v853
        %v855 = vsel %vm849, %v852, %v854
        %v856 = vsel %vm848, %v835, %v838
        %v857 = vsel %vm851, %v844, 920167782
        %v858 = vsel %vm850, %v841, %v857
        %v859 = vsel %vm849, %v856, %v858
        %v860 = vsel %vm848, %v838, %v841
        %v861 = vsel %vm851, %v847, 1326507024
        %v862 = vsel %vm850, %v844, %v861
        %v863 = vsel %vm849, %v860, %v862
        %v864 = vshll.u32 %v824, 8
        %v865 = vmul.u32.u64.compose %v864, %v863
        %v866 = vextract.low.u32 %v865
        %v867 = vextract.high.u32 %v865
        %v868 = vmul.u32.u64.compose %v864, %v859
        %v869 = vextract.low.u32 %v868
        %v870 = vextract.high.u32 %v868
        %v871 = vmul.u32 %v864, %v855
        %v872 = vadd.s32 %v867, %v869
        %vm873 = vc.u32 %v867, %v869
        %v874 = vadd.s32 %v870, 1
        %v875 = vsel %vm873, %v874, %v870
        %v876 = vadd.s32 %v871, %v875
        %v877 = vadd.s32 %v876, 536870912
        %v878 = vshrl.u32 %v877, 30
        %v879 = vshll.u32 %v878, 30
        %v880 = vsub.s32 %v876, %v879
        %vm881 = vcmp.lt.s32.totalorder %v880, 0
        %v882 = vsub.s32 0, %v880
        %v883 = vsel %vm881, %v882, %v880
        %v884 = vclz %v883
        %v885 = vsub.s32 %v884, 2
        %vm886 = vcmp.gt.s32.totalorder 0, %v885
        %v887 = vsel %vm886, 0, %v885
        %v888 = vsub.s32 32, %v887
        %v889 = vshll.u32 %v880, %v887
        %v890 = vshrl.u32 %v872, %v888
        %v891 = vor.u32 %v889, %v890
        %v892 = vsub.s32 4294967266, %v887
        %v893 = vadd.s32 %v892, 127
        %v894 = vshll.u32 %v893, 23
        %v895 = vor.u32 4788187, %v894
        %v896 = vand.u32 2147483647, %v895
        %v898 = vcvt.s32.f32 %v891
        %v899 = vmul.f32 %v898, %v896
        %v900 = vxor.u32 %v899, 2147483648
        %v901 = vsel %vm818, %v900, %v899
        %v902 = vsub.s32 4, %v878
        %v903 = vsel %vm818, %v902, %v878
        %v904 = vsel %vm817, %v503, %v901
        %v905 = vsel %vm817, 0, %v903
        %v906 = vcosq.f32.pop %v904
        %v907 = vsinq.f32.pop %v904
        %vm908 = vweird.f32 %v503
        %v909 = vadd.s32 %v905, 3
        %v910 = vand.u32 %v909, 3
        %vm911 = vcmp.lt.s32.totalorder %v910, 2
        %vm912 = vcmp.eq.s32.totalorder %v910, 0
        %v913 = vxor.u32 %v907, 2147483648
        %v914 = vsel %vm912, %v906, %v913
        %vm915 = vcmp.eq.s32.totalorder %v910, 2
        %v916 = vxor.u32 %v906, 2147483648
        %v917 = vsel %vm915, %v916, %v907
        %v918 = vsel %vm911, %v914, %v917
        %v919 = vsel %vm908, nan, %v918
        %v920 = vmul.f32 %v460, %v607
        %v921 = vmul.f32 %v461, %v711
        %v922 = vmul.f32 %v462, %v815
        %v923 = vmul.f32 %v463, %v919
        %v924 = vsub.f32 1.0, %v460
        %v925 = vsub.f32 1.0, %v461
        %v926 = vsub.f32 1.0, %v462
        %v927 = vsub.f32 1.0, %v463
        %v928 = vmul.f32 %v924, %v500
        %v929 = vmul.f32 %v925, %v501
        %v930 = vmul.f32 %v926, %v502
        %v931 = vmul.f32 %v927, %v503
        %v932 = vadd.f32 %v920, %v928
        %v933 = vadd.f32 %v921, %v929
        %v934 = vadd.f32 %v922, %v930
        %v935 = vadd.f32 %v923, %v931
        %v936 = vand.u32 2147483647, %v932
        %vm937 = vcmp.le.f32.partialorder %v936, 0.7853982
        %vm938 = vcmp.lt.s32.totalorder %v932, 0
        %v939 = vand.u32 %v932, 2139095040
        %v940 = vshrl.u32 %v939, 23
        %v941 = vsub.s32 %v940, 127
        %v942 = vand.u32 2147483647, %v932
        %v943 = vand.u32 %v942, 8388607
        %v944 = vor.u32 %v943, 8388608
        %v945 = vsub.s32 0, %v944
        %v946 = vadd.s32 %v941, 1
        %vm947 = vcmp.gt.s32.totalorder %v946, 0
        %v948 = vsel %vm947, %v946, 0
        %v949 = vshrl.u32 %v948, 5
        %v950 = vand.u32 %v948, 31
        %v951 = vsub.s32 32, %v950
        %v952 = vshrl.u32 683565275, %v951
        %v953 = vshll.u32 683565275, %v950
        %v954 = vshrl.u32 2475754826, %v951
        %v955 = vor.u32 %v953, %v954
        %v956 = vshll.u32 2475754826, %v950
        %v957 = vshrl.u32 2131351028, %v951
        %v958 = vor.u32 %v956, %v957
        %v959 = vshll.u32 2131351028, %v950
        %v960 = vshrl.u32 2102212464, %v951
        %v961 = vor.u32 %v959, %v960
        %v962 = vshll.u32 2102212464, %v950
        %v963 = vshrl.u32 920167782, %v951
        %v964 = vor.u32 %v962, %v963
        %v965 = vshll.u32 920167782, %v950
        %v966 = vshrl.u32 1326507024, %v951
        %v967 = vor.u32 %v965, %v966
        %vm968 = vcmp.lt.s32.totalorder %v949, 1
        %vm969 = vcmp.lt.s32.totalorder %v949, 2
        %vm970 = vcmp.lt.s32.totalorder %v949, 3
        %vm971 = vcmp.lt.s32.totalorder %v949, 4
        %v972 = vsel %vm968, %v952, %v955
        %v973 = vsel %vm971, %v961, 2102212464
        %v974 = vsel %vm970, %v958, %v973
        %v975 = vsel %vm969, %v972, %v974
        %v976 = vsel %vm968, %v955, %v958
        %v977 = vsel %vm971, %v964, 920167782
        %v978 = vsel %vm970, %v961, %v977
        %v979 = vsel %vm969, %v976, %v978
        %v980 = vsel %vm968, %v958, %v961
        %v981 = vsel %vm971, %v967, 1326507024
        %v982 = vsel %vm970, %v964, %v981
        %v983 = vsel %vm969, %v980, %v982
        %v984 = vshll.u32 %v944, 8
        %v985 = vmul.u32.u64.compose %v984, %v983
        %v986 = vextract.low.u32 %v985
        %v987 = vextract.high.u32 %v985
        %v988 = vmul.u32.u64.compose %v984, %v979
        %v989 = vextract.low.u32 %v988
        %v990 = vextract.high.u32 %v988
        %v991 = vmul.u32 %v984, %v975
        %v992 = vadd.s32 %v987, %v989
        %vm993 = vc.u32 %v987, %v989
        %v994 = vadd.s32 %v990, 1
        %v995 = vsel %vm993, %v994, %v990
        %v996 = vadd.s32 %v991, %v995
        %v997 = vadd.s32 %v996, 536870912
        %v998 = vshrl.u32 %v997, 30
        %v999 = vshll.u32 %v998, 30
        %v1000 = vsub.s32 %v996, %v999
        %vm1001 = vcmp.lt.s32.totalorder %v1000, 0
        %v1002 = vsub.s32 0, %v1000
        %v1003 = vsel %vm1001, %v1002, %v1000
        %v1004 = vclz %v1003
        %v1005 = vsub.s32 %v1004, 2
        %vm1006 = vcmp.gt.s32.totalorder 0, %v1005
        %v1007 = vsel %vm1006, 0, %v1005
        %v1008 = vsub.s32 32, %v1007
        %v1009 = vshll.u32 %v1000, %v1007
        %v1010 = vshrl.u32 %v992, %v1008
        %v1011 = vor.u32 %v1009, %v1010
        %v1012 = vsub.s32 4294967266, %v1007
        %v1013 = vadd.s32 %v1012, 127
        %v1014 = vshll.u32 %v1013, 23
        %v1015 = vor.u32 4788187, %v1014
        %v1016 = vand.u32 2147483647, %v1015
        %v1018 = vcvt.s32.f32 %v1011
        %v1019 = vmul.f32 %v1018, %v1016
        %v1020 = vxor.u32 %v1019, 2147483648
        %v1021 = vsel %vm938, %v1020, %v1019
        %v1022 = vsub.s32 4, %v998
        %v1023 = vsel %vm938, %v1022, %v998
        %v1024 = vsel %vm937, %v932, %v1021
        %v1025 = vsel %vm937, 0, %v1023
        %v1026 = vcosq.f32.pop %v1024
        %v1027 = vsinq.f32.pop %v1024
        %vm1028 = vweird.f32 %v932
        %v1029 = vand.u32 %v1025, 3
        %vm1030 = vcmp.lt.s32.totalorder %v1029, 2
        %vm1031 = vcmp.eq.s32.totalorder %v1029, 0
        %v1032 = vxor.u32 %v1027, 2147483648
        %v1033 = vsel %vm1031, %v1026, %v1032
        %vm1034 = vcmp.eq.s32.totalorder %v1029, 2
        %v1035 = vxor.u32 %v1026, 2147483648
        %v1036 = vsel %vm1034, %v1035, %v1027
        %v1037 = vsel %vm1030, %v1033, %v1036
        %v1038 = vsel %vm1028, nan, %v1037
        %v1039 = vand.u32 2147483647, %v933
        %vm1040 = vcmp.le.f32.partialorder %v1039, 0.7853982
        %vm1041 = vcmp.lt.s32.totalorder %v933, 0
        %v1042 = vand.u32 %v933, 2139095040
        %v1043 = vshrl.u32 %v1042, 23
        %v1044 = vsub.s32 %v1043, 127
        %v1045 = vand.u32 2147483647, %v933
        %v1046 = vand.u32 %v1045, 8388607
        %v1047 = vor.u32 %v1046, 8388608
        %v1048 = vsub.s32 0, %v1047
        %v1049 = vadd.s32 %v1044, 1
        %vm1050 = vcmp.gt.s32.totalorder %v1049, 0
        %v1051 = vsel %vm1050, %v1049, 0
        %v1052 = vshrl.u32 %v1051, 5
        %v1053 = vand.u32 %v1051, 31
        %v1054 = vsub.s32 32, %v1053
        %v1055 = vshrl.u32 683565275, %v1054
        %v1056 = vshll.u32 683565275, %v1053
        %v1057 = vshrl.u32 2475754826, %v1054
        %v1058 = vor.u32 %v1056, %v1057
        %v1059 = vshll.u32 2475754826, %v1053
        %v1060 = vshrl.u32 2131351028, %v1054
        %v1061 = vor.u32 %v1059, %v1060
        %v1062 = vshll.u32 2131351028, %v1053
        %v1063 = vshrl.u32 2102212464, %v1054
        %v1064 = vor.u32 %v1062, %v1063
        %v1065 = vshll.u32 2102212464, %v1053
        %v1066 = vshrl.u32 920167782, %v1054
        %v1067 = vor.u32 %v1065, %v1066
        %v1068 = vshll.u32 920167782, %v1053
        %v1069 = vshrl.u32 1326507024, %v1054
        %v1070 = vor.u32 %v1068, %v1069
        %vm1071 = vcmp.lt.s32.totalorder %v1052, 1
        %vm1072 = vcmp.lt.s32.totalorder %v1052, 2
        %vm1073 = vcmp.lt.s32.totalorder %v1052, 3
        %vm1074 = vcmp.lt.s32.totalorder %v1052, 4
        %v1075 = vsel %vm1071, %v1055, %v1058
        %v1076 = vsel %vm1074, %v1064, 2102212464
        %v1077 = vsel %vm1073, %v1061, %v1076
        %v1078 = vsel %vm1072, %v1075, %v1077
        %v1079 = vsel %vm1071, %v1058, %v1061
        %v1080 = vsel %vm1074, %v1067, 920167782
        %v1081 = vsel %vm1073, %v1064, %v1080
        %v1082 = vsel %vm1072, %v1079, %v1081
        %v1083 = vsel %vm1071, %v1061, %v1064
        %v1084 = vsel %vm1074, %v1070, 1326507024
        %v1085 = vsel %vm1073, %v1067, %v1084
        %v1086 = vsel %vm1072, %v1083, %v1085
        %v1087 = vshll.u32 %v1047, 8
        %v1088 = vmul.u32.u64.compose %v1087, %v1086
        %v1089 = vextract.low.u32 %v1088
        %v1090 = vextract.high.u32 %v1088
        %v1091 = vmul.u32.u64.compose %v1087, %v1082
        %v1092 = vextract.low.u32 %v1091
        %v1093 = vextract.high.u32 %v1091
        %v1094 = vmul.u32 %v1087, %v1078
        %v1095 = vadd.s32 %v1090, %v1092
        %vm1096 = vc.u32 %v1090, %v1092
        %v1097 = vadd.s32 %v1093, 1
        %v1098 = vsel %vm1096, %v1097, %v1093
        %v1099 = vadd.s32 %v1094, %v1098
        %v1100 = vadd.s32 %v1099, 536870912
        %v1101 = vshrl.u32 %v1100, 30
        %v1102 = vshll.u32 %v1101, 30
        %v1103 = vsub.s32 %v1099, %v1102
        %vm1104 = vcmp.lt.s32.totalorder %v1103, 0
        %v1105 = vsub.s32 0, %v1103
        %v1106 = vsel %vm1104, %v1105, %v1103
        %v1107 = vclz %v1106
        %v1108 = vsub.s32 %v1107, 2
        %vm1109 = vcmp.gt.s32.totalorder 0, %v1108
        %v1110 = vsel %vm1109, 0, %v1108
        %v1111 = vsub.s32 32, %v1110
        %v1112 = vshll.u32 %v1103, %v1110
        %v1113 = vshrl.u32 %v1095, %v1111
        %v1114 = vor.u32 %v1112, %v1113
        %v1115 = vsub.s32 4294967266, %v1110
        %v1116 = vadd.s32 %v1115, 127
        %v1117 = vshll.u32 %v1116, 23
        %v1118 = vor.u32 4788187, %v1117
        %v1119 = vand.u32 2147483647, %v1118
        %v1121 = vcvt.s32.f32 %v1114
        %v1122 = vmul.f32 %v1121, %v1119
        %v1123 = vxor.u32 %v1122, 2147483648
        %v1124 = vsel %vm1041, %v1123, %v1122
        %v1125 = vsub.s32 4, %v1101
        %v1126 = vsel %vm1041, %v1125, %v1101
        %v1127 = vsel %vm1040, %v933, %v1124
        %v1128 = vsel %vm1040, 0, %v1126
        %v1129 = vcosq.f32.pop %v1127
        %v1130 = vsinq.f32.pop %v1127
        %vm1131 = vweird.f32 %v933
        %v1132 = vand.u32 %v1128, 3
        %vm1133 = vcmp.lt.s32.totalorder %v1132, 2
        %vm1134 = vcmp.eq.s32.totalorder %v1132, 0
        %v1135 = vxor.u32 %v1130, 2147483648
        %v1136 = vsel %vm1134, %v1129, %v1135
        %vm1137 = vcmp.eq.s32.totalorder %v1132, 2
        %v1138 = vxor.u32 %v1129, 2147483648
        %v1139 = vsel %vm1137, %v1138, %v1130
        %v1140 = vsel %vm1133, %v1136, %v1139
        %v1141 = vsel %vm1131, nan, %v1140
        %v1142 = vand.u32 2147483647, %v934
        %vm1143 = vcmp.le.f32.partialorder %v1142, 0.7853982
        %vm1144 = vcmp.lt.s32.totalorder %v934, 0
        %v1145 = vand.u32 %v934, 2139095040
        %v1146 = vshrl.u32 %v1145, 23
        %v1147 = vsub.s32 %v1146, 127
        %v1148 = vand.u32 2147483647, %v934
        %v1149 = vand.u32 %v1148, 8388607
        %v1150 = vor.u32 %v1149, 8388608
        %v1151 = vsub.s32 0, %v1150
        %v1152 = vadd.s32 %v1147, 1
        %vm1153 = vcmp.gt.s32.totalorder %v1152, 0
        %v1154 = vsel %vm1153, %v1152, 0
        %v1155 = vshrl.u32 %v1154, 5
        %v1156 = vand.u32 %v1154, 31
        %v1157 = vsub.s32 32, %v1156
        %v1158 = vshrl.u32 683565275, %v1157
        %v1159 = vshll.u32 683565275, %v1156
        %v1160 = vshrl.u32 2475754826, %v1157
        %v1161 = vor.u32 %v1159, %v1160
        %v1162 = vshll.u32 2475754826, %v1156
        %v1163 = vshrl.u32 2131351028, %v1157
        %v1164 = vor.u32 %v1162, %v1163
        %v1165 = vshll.u32 2131351028, %v1156
        %v1166 = vshrl.u32 2102212464, %v1157
        %v1167 = vor.u32 %v1165, %v1166
        %v1168 = vshll.u32 2102212464, %v1156
        %v1169 = vshrl.u32 920167782, %v1157
        %v1170 = vor.u32 %v1168, %v1169
        %v1171 = vshll.u32 920167782, %v1156
        %v1172 = vshrl.u32 1326507024, %v1157
        %v1173 = vor.u32 %v1171, %v1172
        %vm1174 = vcmp.lt.s32.totalorder %v1155, 1
        %vm1175 = vcmp.lt.s32.totalorder %v1155, 2
        %vm1176 = vcmp.lt.s32.totalorder %v1155, 3
        %vm1177 = vcmp.lt.s32.totalorder %v1155, 4
        %v1178 = vsel %vm1174, %v1158, %v1161
        %v1179 = vsel %vm1177, %v1167, 2102212464
        %v1180 = vsel %vm1176, %v1164, %v1179
        %v1181 = vsel %vm1175, %v1178, %v1180
        %v1182 = vsel %vm1174, %v1161, %v1164
        %v1183 = vsel %vm1177, %v1170, 920167782
        %v1184 = vsel %vm1176, %v1167, %v1183
        %v1185 = vsel %vm1175, %v1182, %v1184
        %v1186 = vsel %vm1174, %v1164, %v1167
        %v1187 = vsel %vm1177, %v1173, 1326507024
        %v1188 = vsel %vm1176, %v1170, %v1187
        %v1189 = vsel %vm1175, %v1186, %v1188
        %v1190 = vshll.u32 %v1150, 8
        %v1191 = vmul.u32.u64.compose %v1190, %v1189
        %v1192 = vextract.low.u32 %v1191
        %v1193 = vextract.high.u32 %v1191
        %v1194 = vmul.u32.u64.compose %v1190, %v1185
        %v1195 = vextract.low.u32 %v1194
        %v1196 = vextract.high.u32 %v1194
        %v1197 = vmul.u32 %v1190, %v1181
        %v1198 = vadd.s32 %v1193, %v1195
        %vm1199 = vc.u32 %v1193, %v1195
        %v1200 = vadd.s32 %v1196, 1
        %v1201 = vsel %vm1199, %v1200, %v1196
        %v1202 = vadd.s32 %v1197, %v1201
        %v1203 = vadd.s32 %v1202, 536870912
        %v1204 = vshrl.u32 %v1203, 30
        %v1205 = vshll.u32 %v1204, 30
        %v1206 = vsub.s32 %v1202, %v1205
        %vm1207 = vcmp.lt.s32.totalorder %v1206, 0
        %v1208 = vsub.s32 0, %v1206
        %v1209 = vsel %vm1207, %v1208, %v1206
        %v1210 = vclz %v1209
        %v1211 = vsub.s32 %v1210, 2
        %vm1212 = vcmp.gt.s32.totalorder 0, %v1211
        %v1213 = vsel %vm1212, 0, %v1211
        %v1214 = vsub.s32 32, %v1213
        %v1215 = vshll.u32 %v1206, %v1213
        %v1216 = vshrl.u32 %v1198, %v1214
        %v1217 = vor.u32 %v1215, %v1216
        %v1218 = vsub.s32 4294967266, %v1213
        %v1219 = vadd.s32 %v1218, 127
        %v1220 = vshll.u32 %v1219, 23
        %v1221 = vor.u32 4788187, %v1220
        %v1222 = vand.u32 2147483647, %v1221
        %v1224 = vcvt.s32.f32 %v1217
        %v1225 = vmul.f32 %v1224, %v1222
        %v1226 = vxor.u32 %v1225, 2147483648
        %v1227 = vsel %vm1144, %v1226, %v1225
        %v1228 = vsub.s32 4, %v1204
        %v1229 = vsel %vm1144, %v1228, %v1204
        %v1230 = vsel %vm1143, %v934, %v1227
        %v1231 = vsel %vm1143, 0, %v1229
        %v1232 = vcosq.f32.pop %v1230
        %v1233 = vsinq.f32.pop %v1230
        %vm1234 = vweird.f32 %v934
        %v1235 = vand.u32 %v1231, 3
        %vm1236 = vcmp.lt.s32.totalorder %v1235, 2
        %vm1237 = vcmp.eq.s32.totalorder %v1235, 0
        %v1238 = vxor.u32 %v1233, 2147483648
        %v1239 = vsel %vm1237, %v1232, %v1238
        %vm1240 = vcmp.eq.s32.totalorder %v1235, 2
        %v1241 = vxor.u32 %v1232, 2147483648
        %v1242 = vsel %vm1240, %v1241, %v1233
        %v1243 = vsel %vm1236, %v1239, %v1242
        %v1244 = vsel %vm1234, nan, %v1243
        %v1245 = vand.u32 2147483647, %v935
        %vm1246 = vcmp.le.f32.partialorder %v1245, 0.7853982
        %vm1247 = vcmp.lt.s32.totalorder %v935, 0
        %v1248 = vand.u32 %v935, 2139095040
        %v1249 = vshrl.u32 %v1248, 23
        %v1250 = vsub.s32 %v1249, 127
        %v1251 = vand.u32 2147483647, %v935
        %v1252 = vand.u32 %v1251, 8388607
        %v1253 = vor.u32 %v1252, 8388608
        %v1254 = vsub.s32 0, %v1253
        %v1255 = vadd.s32 %v1250, 1
        %vm1256 = vcmp.gt.s32.totalorder %v1255, 0
        %v1257 = vsel %vm1256, %v1255, 0
        %v1258 = vshrl.u32 %v1257, 5
        %v1259 = vand.u32 %v1257, 31
        %v1260 = vsub.s32 32, %v1259
        %v1261 = vshrl.u32 683565275, %v1260
        %v1262 = vshll.u32 683565275, %v1259
        %v1263 = vshrl.u32 2475754826, %v1260
        %v1264 = vor.u32 %v1262, %v1263
        %v1265 = vshll.u32 2475754826, %v1259
        %v1266 = vshrl.u32 2131351028, %v1260
        %v1267 = vor.u32 %v1265, %v1266
        %v1268 = vshll.u32 2131351028, %v1259
        %v1269 = vshrl.u32 2102212464, %v1260
        %v1270 = vor.u32 %v1268, %v1269
        %v1271 = vshll.u32 2102212464, %v1259
        %v1272 = vshrl.u32 920167782, %v1260
        %v1273 = vor.u32 %v1271, %v1272
        %v1274 = vshll.u32 920167782, %v1259
        %v1275 = vshrl.u32 1326507024, %v1260
        %v1276 = vor.u32 %v1274, %v1275
        %vm1277 = vcmp.lt.s32.totalorder %v1258, 1
        %vm1278 = vcmp.lt.s32.totalorder %v1258, 2
        %vm1279 = vcmp.lt.s32.totalorder %v1258, 3
        %vm1280 = vcmp.lt.s32.totalorder %v1258, 4
        %v1281 = vsel %vm1277, %v1261, %v1264
        %v1282 = vsel %vm1280, %v1270, 2102212464
        %v1283 = vsel %vm1279, %v1267, %v1282
        %v1284 = vsel %vm1278, %v1281, %v1283
        %v1285 = vsel %vm1277, %v1264, %v1267
        %v1286 = vsel %vm1280, %v1273, 920167782
        %v1287 = vsel %vm1279, %v1270, %v1286
        %v1288 = vsel %vm1278, %v1285, %v1287
        %v1289 = vsel %vm1277, %v1267, %v1270
        %v1290 = vsel %vm1280, %v1276, 1326507024
        %v1291 = vsel %vm1279, %v1273, %v1290
        %v1292 = vsel %vm1278, %v1289, %v1291
        %v1293 = vshll.u32 %v1253, 8
        %v1294 = vmul.u32.u64.compose %v1293, %v1292
        %v1295 = vextract.low.u32 %v1294
        %v1296 = vextract.high.u32 %v1294
        %v1297 = vmul.u32.u64.compose %v1293, %v1288
        %v1298 = vextract.low.u32 %v1297
        %v1299 = vextract.high.u32 %v1297
        %v1300 = vmul.u32 %v1293, %v1284
        %v1301 = vadd.s32 %v1296, %v1298
        %vm1302 = vc.u32 %v1296, %v1298
        %v1303 = vadd.s32 %v1299, 1
        %v1304 = vsel %vm1302, %v1303, %v1299
        %v1305 = vadd.s32 %v1300, %v1304
        %v1306 = vadd.s32 %v1305, 536870912
        %v1307 = vshrl.u32 %v1306, 30
        %v1308 = vshll.u32 %v1307, 30
        %v1309 = vsub.s32 %v1305, %v1308
        %vm1310 = vcmp.lt.s32.totalorder %v1309, 0
        %v1311 = vsub.s32 0, %v1309
        %v1312 = vsel %vm1310, %v1311, %v1309
        %v1313 = vclz %v1312
        %v1314 = vsub.s32 %v1313, 2
        %vm1315 = vcmp.gt.s32.totalorder 0, %v1314
        %v1316 = vsel %vm1315, 0, %v1314
        %v1317 = vsub.s32 32, %v1316
        %v1318 = vshll.u32 %v1309, %v1316
        %v1319 = vshrl.u32 %v1301, %v1317
        %v1320 = vor.u32 %v1318, %v1319
        %v1321 = vsub.s32 4294967266, %v1316
        %v1322 = vadd.s32 %v1321, 127
        %v1323 = vshll.u32 %v1322, 23
        %v1324 = vor.u32 4788187, %v1323
        %v1325 = vand.u32 2147483647, %v1324
        %v1327 = vcvt.s32.f32 %v1320
        %v1328 = vmul.f32 %v1327, %v1325
        %v1329 = vxor.u32 %v1328, 2147483648
        %v1330 = vsel %vm1247, %v1329, %v1328
        %v1331 = vsub.s32 4, %v1307
        %v1332 = vsel %vm1247, %v1331, %v1307
        %v1333 = vsel %vm1246, %v935, %v1330
        %v1334 = vsel %vm1246, 0, %v1332
        %v1335 = vcosq.f32.pop %v1333
        %v1336 = vsinq.f32.pop %v1333
        %vm1337 = vweird.f32 %v935
        %v1338 = vand.u32 %v1334, 3
        %vm1339 = vcmp.lt.s32.totalorder %v1338, 2
        %vm1340 = vcmp.eq.s32.totalorder %v1338, 0
        %v1341 = vxor.u32 %v1336, 2147483648
        %v1342 = vsel %vm1340, %v1335, %v1341
        %vm1343 = vcmp.eq.s32.totalorder %v1338, 2
        %v1344 = vxor.u32 %v1335, 2147483648
        %v1345 = vsel %vm1343, %v1344, %v1336
        %v1346 = vsel %vm1339, %v1342, %v1345
        %v1347 = vsel %vm1337, nan, %v1346
        %v1348 = vmul.f32 %v476, %v1038
        %v1349 = vmul.f32 %v477, %v1141
        %v1350 = vmul.f32 %v478, %v1244
        %v1351 = vmul.f32 %v479, %v1347
        %v1352 = vsub.f32 1.0, %v476
        %v1353 = vsub.f32 1.0, %v477
        %v1354 = vsub.f32 1.0, %v478
        %v1355 = vsub.f32 1.0, %v479
        %v1356 = vmul.f32 %v1352, %v932
        %v1357 = vmul.f32 %v1353, %v933
        %v1358 = vmul.f32 %v1354, %v934
        %v1359 = vmul.f32 %v1355, %v935
        %v1360 = vadd.f32 %v1348, %v1356
        %v1361 = vadd.f32 %v1349, %v1357
        %v1362 = vadd.f32 %v1350, %v1358
        %v1363 = vadd.f32 %v1351, %v1359
        %v1364 = vand.u32 2147483647, %v1360
        %v1365 = vand.u32 2147483647, %v1361
        %v1366 = vand.u32 2147483647, %v1362
        %v1367 = vand.u32 2147483647, %v1363
        %v1368 = vadd.f32 %v1364, 1e-10
        %v1369 = vadd.f32 %v1365, 1e-10
        %v1370 = vadd.f32 %v1366, 1e-10
        %v1371 = vadd.f32 %v1367, 1e-10
        %v1372 = vlog2.pop %v1368
        %v1373 = vmul.f32 %v1372, 0.6931472
        %v1374 = vlog2.pop %v1369
        %v1375 = vmul.f32 %v1374, 0.6931472
        %v1376 = vlog2.pop %v1370
        %v1377 = vmul.f32 %v1376, 0.6931472
        %v1378 = vlog2.pop %v1371
        %v1379 = vmul.f32 %v1378, 0.6931472
        %v1380 = vld [vmem:[#allocation5 + $0xa0] sm:$0xff]
        %v1381 = vld [vmem:[#allocation5 + $0xa8] sm:$0xff]
        %v1382 = vld [vmem:[#allocation5 + $0xb0] sm:$0xff]
        %v1383 = vld [vmem:[#allocation5 + $0xb8] sm:$0xff]
        %v1384 = vld [vmem:[#allocation5 + $0xc0] sm:$0xff]
        %v1385 = vld [vmem:[#allocation5 + $0xc8] sm:$0xff]
        %v1386 = vld [vmem:[#allocation5 + $0xd0] sm:$0xff]
        %v1387 = vld [vmem:[#allocation5 + $0xd8] sm:$0xff]
        %v1388 = vld [vmem:[#allocation5 + $0xe0] sm:$0xff]
        %v1389 = vld [vmem:[#allocation5 + $0xe8] sm:$0xff]
        %v1390 = vld [vmem:[#allocation5 + $0xf0] sm:$0xff]
        %v1391 = vld [vmem:[#allocation5 + $0xf8] sm:$0xff]
        %v1392 = vld [vmem:[#allocation5 + $0x100] sm:$0xff]
        %v1393 = vld [vmem:[#allocation5 + $0x108] sm:$0xff]
        %v1394 = vld [vmem:[#allocation5 + $0x110] sm:$0xff]
        %v1395 = vld [vmem:[#allocation5 + $0x118] sm:$0xff]
        %v1396 = vld [vmem:[#allocation5 + $0x120] sm:$0xff]
        %v1397 = vld [vmem:[#allocation5 + $0x128] sm:$0xff]
        %v1398 = vld [vmem:[#allocation5 + $0x130] sm:$0xff]
        %v1399 = vld [vmem:[#allocation5 + $0x138] sm:$0xff]
        %vm1400 = vcmask 523264
        %v1402 = vsel %vm1400, %v1380, 0
        %v1405 = vsel %vm1400, %v1381, 0
        %v1408 = vsel %vm1400, %v1382, 0
        %v1411 = vsel %vm1400, %v1383, 0
        %v1414 = vsel %vm1400, %v1384, 0
        %v1417 = vsel %vm1400, %v1385, 0
        %v1420 = vsel %vm1400, %v1386, 0
        %v1423 = vsel %vm1400, %v1387, 0
        %v1426 = vsel %vm1400, %v1388, 0
        %v1429 = vsel %vm1400, %v1389, 0
        %v1432 = vsel %vm1400, %v1390, 0
        %v1435 = vsel %vm1400, %v1391, 0
        %v1438 = vsel %vm1400, %v1392, 0
        %v1441 = vsel %vm1400, %v1393, 0
        %v1444 = vsel %vm1400, %v1394, 0
        %v1447 = vsel %vm1400, %v1395, 0
        %v1450 = vsel %vm1400, %v1396, 0
        %v1453 = vsel %vm1400, %v1397, 0
        %v1456 = vsel %vm1400, %v1398, 0
        %v1459 = vsel %vm1400, %v1399, 0
        %1461 = vmatprep.subr.mxu0 0.0
        %1462 = vmatpush1.msra.mxu0 %v1360
        %1463 = vmatprep.subr.mxu0 0.0
        %1464 = vmatpush1.msra.mxu0 %v1361
        %1465 = vmatprep.subr.mxu0 0.0
        %1466 = vmatpush1.msra.mxu0 %v1362
        %1467 = vmatprep.subr.mxu0 0.0
        %1468 = vmatpush1.msra.mxu0 %v1363
        %1469 = vmatprep.subr.mxu0 0.0
        %1470 = vmatpush1.msra.mxu0 %v1373
        %1471 = vmatprep.subr.mxu0 0.0
        %1472 = vmatpush1.msra.mxu0 %v1375
        %1473 = vmatprep.subr.mxu0 0.0
        %1474 = vmatpush1.msra.mxu0 %v1377
        %1475 = vmatprep.subr.mxu0 0.0
        %1476 = vmatpush1.msra.mxu0 %v1379
        %1477 = vmatprep.subr.mxu0 0.0
        %1478 = vmatpush1.msra.mxu0 0.0
        %1479 = vmatprep.subr.mxu0 0.0
        %1480 = vmatpush1.msra.mxu0 0.0
        %1481 = vmatprep.subr.mxu0 0.0
        %1482 = vmatpush1.msra.mxu0 0.0
        %1483 = vmatprep.subr.mxu0 0.0
        %1484 = vmatpush1.msra.mxu0 0.0
        %1485 = vmatprep.subr.mxu0 0.0
        %1486 = vmatpush1.msra.mxu0 0.0
        %1487 = vmatprep.subr.mxu0 0.0
        %1488 = vmatpush1.msra.mxu0 0.0
        %1489 = vmatprep.subr.mxu0 0.0
        %1490 = vmatpush1.msra.mxu0 0.0
        %1491 = vmatprep.subr.mxu0 0.0
        %1492 = vmatpush1.msra.mxu0 0.0
        %1493 = vmatprep.subr.mxu0 0.0
        %1494 = vmatpush1.msra.mxu0 0.0
        %1495 = vmatprep.subr.mxu0 0.0
        %1496 = vmatpush1.msra.mxu0 0.0
        %1497 = vmatprep.subr.mxu0 0.0
        %1498 = vmatpush1.msra.mxu0 0.0
        %1499 = vmatprep.subr.mxu0 0.0
        %1500 = vmatpush1.msra.mxu0 0.0
        %1501 = vmatprep.subr.mxu0 0.0
        %1502 = vmatpush1.msra.mxu0 0.0
        %1503 = vmatprep.subr.mxu0 0.0
        %1504 = vmatpush1.msra.mxu0 0.0
        %1505 = vmatprep.subr.mxu0 0.0
        %1506 = vmatpush1.msra.mxu0 0.0
        %1507 = vmatprep.subr.mxu0 0.0
        %1508 = vmatpush1.msra.mxu0 0.0
        %1509 = vmatprep.subr.mxu0 0.0
        %1510 = vmatpush1.msra.mxu0 0.0
        %1511 = vmatprep.subr.mxu0 0.0
        %1512 = vmatpush1.msra.mxu0 0.0
        %1513 = vmatprep.subr.mxu0 0.0
        %1514 = vmatpush1.msra.mxu0 0.0
        %1515 = vmatprep.subr.mxu0 0.0
        %1516 = vmatpush1.msra.mxu0 0.0
        %1517 = vmatprep.subr.mxu0 0.0
        %1518 = vmatpush1.msra.mxu0 0.0
        %1519 = vmatprep.subr.mxu0 0.0
        %1520 = vmatpush1.msra.mxu0 0.0
        %1521 = vmatprep.subr.mxu0 0.0
        %1522 = vmatpush1.msra.mxu0 0.0
        %1523 = vmatprep.subr.mxu0 0.0
        %1524 = vmatpush1.msra.mxu0 0.0
        %1525 = vmatprep.mubr.f32.mxu0 0.0
        %1526 = vmatmul.mubr.f32.gmra.mrb[0].mxu0 %v1402
        %v1527 = vpop.f32.mrb[0].mxu0
        %v1528 = vadd.f32 0.0, %v1527
        %v1529 = vpop.f32.mrb[0].mxu0
        %1530 = vmatprep.mubr.f32.mxu0 0.0
        %1531 = vmatmul.mubr.f32.gmra.mrb[0].mxu0 %v1405
        %v1532 = vpop.f32.mrb[0].mxu0
        %v1533 = vadd.f32 0.0, %v1532
        %v1534 = vpop.f32.mrb[0].mxu0
        %1535 = vmatprep.mubr.f32.mxu0 0.0
        %1536 = vmatmul.mubr.f32.gmra.mrb[0].mxu0 %v1408
        %v1537 = vpop.f32.mrb[0].mxu0
        %v1538 = vadd.f32 0.0, %v1537
        %v1539 = vpop.f32.mrb[0].mxu0
        %1540 = vmatprep.mubr.f32.mxu0 0.0
        %1541 = vmatmul.mubr.f32.gmra.mrb[0].mxu0 %v1411
        %v1542 = vpop.f32.mrb[0].mxu0
        %v1543 = vadd.f32 0.0, %v1542
        %v1544 = vpop.f32.mrb[0].mxu0
        %1545 = vmatprep.mubr.f32.mxu0 0.0
        %1546 = vmatmul.mubr.f32.gmra.mrb[0].mxu0 %v1414
        %v1547 = vpop.f32.mrb[0].mxu0
        %v1548 = vadd.f32 0.0, %v1547
        %v1549 = vpop.f32.mrb[0].mxu0
        %1550 = vmatprep.mubr.f32.mxu0 0.0
        %1551 = vmatmul.mubr.f32.gmra.mrb[0].mxu0 %v1417
        %v1552 = vpop.f32.mrb[0].mxu0
        %v1553 = vadd.f32 0.0, %v1552
        %v1554 = vpop.f32.mrb[0].mxu0
        %1555 = vmatprep.mubr.f32.mxu0 0.0
        %1556 = vmatmul.mubr.f32.gmra.mrb[0].mxu0 %v1420
        %v1557 = vpop.f32.mrb[0].mxu0
        %v1558 = vadd.f32 0.0, %v1557
        %v1559 = vpop.f32.mrb[0].mxu0
        %1560 = vmatprep.mubr.f32.mxu0 0.0
        %1561 = vmatmul.mubr.f32.gmra.mrb[0].mxu0 %v1423
        %v1562 = vpop.f32.mrb[0].mxu0
        %v1563 = vadd.f32 0.0, %v1562
        %v1564 = vpop.f32.mrb[0].mxu0
        %1565 = vmatprep.mubr.f32.mxu0 0.0
        %1566 = vmatmul.mubr.f32.gmra.mrb[0].mxu0 %v1426
        %v1567 = vpop.f32.mrb[0].mxu0
        %v1568 = vadd.f32 0.0, %v1567
        %v1569 = vpop.f32.mrb[0].mxu0
        %1570 = vmatprep.mubr.f32.mxu0 0.0
        %1571 = vmatmul.mubr.f32.gmra.mrb[0].mxu0 %v1429
        %v1572 = vpop.f32.mrb[0].mxu0
        %v1573 = vadd.f32 0.0, %v1572
        %v1574 = vpop.f32.mrb[0].mxu0
        %1575 = vmatprep.mubr.f32.mxu0 0.0
        %1576 = vmatmul.mubr.f32.gmra.mrb[0].mxu0 %v1432
        %v1577 = vpop.f32.mrb[0].mxu0
        %v1578 = vadd.f32 0.0, %v1577
        %v1579 = vpop.f32.mrb[0].mxu0
        %1580 = vmatprep.mubr.f32.mxu0 0.0
        %1581 = vmatmul.mubr.f32.gmra.mrb[0].mxu0 %v1435
        %v1582 = vpop.f32.mrb[0].mxu0
        %v1583 = vadd.f32 0.0, %v1582
        %v1584 = vpop.f32.mrb[0].mxu0
        %1585 = vmatprep.mubr.f32.mxu0 0.0
        %1586 = vmatmul.mubr.f32.gmra.mrb[0].mxu0 %v1438
        %v1587 = vpop.f32.mrb[0].mxu0
        %v1588 = vadd.f32 0.0, %v1587
        %v1589 = vpop.f32.mrb[0].mxu0
        %1590 = vmatprep.mubr.f32.mxu0 0.0
        %1591 = vmatmul.mubr.f32.gmra.mrb[0].mxu0 %v1441
        %v1592 = vpop.f32.mrb[0].mxu0
        %v1593 = vadd.f32 0.0, %v1592
        %v1594 = vpop.f32.mrb[0].mxu0
        %1595 = vmatprep.mubr.f32.mxu0 0.0
        %1596 = vmatmul.mubr.f32.gmra.mrb[0].mxu0 %v1444
        %v1597 = vpop.f32.mrb[0].mxu0
        %v1598 = vadd.f32 0.0, %v1597
        %v1599 = vpop.f32.mrb[0].mxu0
        %1600 = vmatprep.mubr.f32.mxu0 0.0
        %1601 = vmatmul.mubr.f32.gmra.mrb[0].mxu0 %v1447
        %v1602 = vpop.f32.mrb[0].mxu0
        %v1603 = vadd.f32 0.0, %v1602
        %v1604 = vpop.f32.mrb[0].mxu0
        %1605 = vmatprep.mubr.f32.mxu0 0.0
        %1606 = vmatmul.mubr.f32.gmra.mrb[0].mxu0 %v1450
        %v1607 = vpop.f32.mrb[0].mxu0
        %v1608 = vadd.f32 0.0, %v1607
        %v1609 = vpop.f32.mrb[0].mxu0
        %1610 = vmatprep.mubr.f32.mxu0 0.0
        %1611 = vmatmul.mubr.f32.gmra.mrb[0].mxu0 %v1453
        %v1612 = vpop.f32.mrb[0].mxu0
        %v1613 = vadd.f32 0.0, %v1612
        %v1614 = vpop.f32.mrb[0].mxu0
        %1615 = vmatprep.mubr.f32.mxu0 0.0
        %1616 = vmatmul.mubr.f32.gmra.mrb[0].mxu0 %v1456
        %v1617 = vpop.f32.mrb[0].mxu0
        %v1618 = vadd.f32 0.0, %v1617
        %v1619 = vpop.f32.mrb[0].mxu0
        %1620 = vmatprep.mubr.f32.mxu0 0.0
        %1621 = vmatmul.mubr.f32.gmra.mrb[0].mxu0 %v1459
        %v1622 = vpop.f32.mrb[0].mxu0
        %v1623 = vadd.f32 0.0, %v1622
        %v1624 = vpop.f32.mrb[0].mxu0
        %1625 = vdwg.mxu0
        %v1626 = vmul.f32 %v1548, 0.5
        %v1627 = vmul.f32 %v1553, 0.5
        %v1628 = vmul.f32 %v1558, 0.5
        %v1629 = vmul.f32 %v1563, 0.5
        %v1630 = vtanh.pop %v1626
        %v1631 = vtanh.pop %v1627
        %v1632 = vtanh.pop %v1628
        %v1633 = vtanh.pop %v1629
        %v1634 = vadd.f32 %v1630, 1.0
        %v1635 = vadd.f32 %v1631, 1.0
        %v1636 = vadd.f32 %v1632, 1.0
        %v1637 = vadd.f32 %v1633, 1.0
        %v1638 = vmul.f32 %v1634, 0.5
        %v1639 = vmul.f32 %v1635, 0.5
        %v1640 = vmul.f32 %v1636, 0.5
        %v1641 = vmul.f32 %v1637, 0.5
        %v1642 = vmul.f32 %v1568, 0.5
        %v1643 = vmul.f32 %v1573, 0.5
        %v1644 = vmul.f32 %v1578, 0.5
        %v1645 = vmul.f32 %v1583, 0.5
        %v1646 = vtanh.pop %v1642
        %v1647 = vtanh.pop %v1643
        %v1648 = vtanh.pop %v1644
        %v1649 = vtanh.pop %v1645
        %v1650 = vadd.f32 %v1646, 1.0
        %v1651 = vadd.f32 %v1647, 1.0
        %v1652 = vadd.f32 %v1648, 1.0
        %v1653 = vadd.f32 %v1649, 1.0
        %v1654 = vmul.f32 %v1650, 0.5
        %v1655 = vmul.f32 %v1651, 0.5
        %v1656 = vmul.f32 %v1652, 0.5
        %v1657 = vmul.f32 %v1653, 0.5
        %v1658 = vmul.f32 %v1588, 0.5
        %v1659 = vmul.f32 %v1593, 0.5
        %v1660 = vmul.f32 %v1598, 0.5
        %v1661 = vmul.f32 %v1603, 0.5
        %v1662 = vtanh.pop %v1658
        %v1663 = vtanh.pop %v1659
        %v1664 = vtanh.pop %v1660
        %v1665 = vtanh.pop %v1661
        %v1666 = vadd.f32 %v1662, 1.0
        %v1667 = vadd.f32 %v1663, 1.0
        %v1668 = vadd.f32 %v1664, 1.0
        %v1669 = vadd.f32 %v1665, 1.0
        %v1670 = vmul.f32 %v1666, 0.5
        %v1671 = vmul.f32 %v1667, 0.5
        %v1672 = vmul.f32 %v1668, 0.5
        %v1673 = vmul.f32 %v1669, 0.5
        %v1674 = vmul.f32 %v1608, 1.442695
        %v1675 = vpow.pop %v1674
        %v1676 = vmul.f32 %v1613, 1.442695
        %v1677 = vpow.pop %v1676
        %v1678 = vmul.f32 %v1618, 1.442695
        %v1679 = vpow.pop %v1678
        %v1680 = vmul.f32 %v1623, 1.442695
        %v1681 = vpow.pop %v1680
        %v1682 = vmul.f32 %v1638, %v1528
        %v1683 = vmul.f32 %v1639, %v1533
        %v1684 = vmul.f32 %v1640, %v1538
        %v1685 = vmul.f32 %v1641, %v1543
        %v1686 = vsub.f32 1.0, %v1638
        %v1687 = vsub.f32 1.0, %v1639
        %v1688 = vsub.f32 1.0, %v1640
        %v1689 = vsub.f32 1.0, %v1641
        %v1690 = vmul.f32 %v1686, %v1675
        %v1691 = vmul.f32 %v1687, %v1677
        %v1692 = vmul.f32 %v1688, %v1679
        %v1693 = vmul.f32 %v1689, %v1681
        %v1694 = vadd.f32 %v1682, %v1690
        %v1695 = vadd.f32 %v1683, %v1691
        %v1696 = vadd.f32 %v1684, %v1692
        %v1697 = vadd.f32 %v1685, %v1693
        %v1698 = vand.u32 2147483647, %v1694
        %vm1699 = vcmp.le.f32.partialorder %v1698, 0.7853982
        %vm1700 = vcmp.lt.s32.totalorder %v1694, 0
        %v1701 = vand.u32 %v1694, 2139095040
        %v1702 = vshrl.u32 %v1701, 23
        %v1703 = vsub.s32 %v1702, 127
        %v1704 = vand.u32 2147483647, %v1694
        %v1705 = vand.u32 %v1704, 8388607
        %v1706 = vor.u32 %v1705, 8388608
        %v1707 = vsub.s32 0, %v1706
        %v1708 = vadd.s32 %v1703, 1
        %vm1709 = vcmp.gt.s32.totalorder %v1708, 0
        %v1710 = vsel %vm1709, %v1708, 0
        %v1711 = vshrl.u32 %v1710, 5
        %v1712 = vand.u32 %v1710, 31
        %v1713 = vsub.s32 32, %v1712
        %v1714 = vshrl.u32 683565275, %v1713
        %v1715 = vshll.u32 683565275, %v1712
        %v1716 = vshrl.u32 2475754826, %v1713
        %v1717 = vor.u32 %v1715, %v1716
        %v1718 = vshll.u32 2475754826, %v1712
        %v1719 = vshrl.u32 2131351028, %v1713
        %v1720 = vor.u32 %v1718, %v1719
        %v1721 = vshll.u32 2131351028, %v1712
        %v1722 = vshrl.u32 2102212464, %v1713
        %v1723 = vor.u32 %v1721, %v1722
        %v1724 = vshll.u32 2102212464, %v1712
        %v1725 = vshrl.u32 920167782, %v1713
        %v1726 = vor.u32 %v1724, %v1725
        %v1727 = vshll.u32 920167782, %v1712
        %v1728 = vshrl.u32 1326507024, %v1713
        %v1729 = vor.u32 %v1727, %v1728
        %vm1730 = vcmp.lt.s32.totalorder %v1711, 1
        %vm1731 = vcmp.lt.s32.totalorder %v1711, 2
        %vm1732 = vcmp.lt.s32.totalorder %v1711, 3
        %vm1733 = vcmp.lt.s32.totalorder %v1711, 4
        %v1734 = vsel %vm1730, %v1714, %v1717
        %v1735 = vsel %vm1733, %v1723, 2102212464
        %v1736 = vsel %vm1732, %v1720, %v1735
        %v1737 = vsel %vm1731, %v1734, %v1736
        %v1738 = vsel %vm1730, %v1717, %v1720
        %v1739 = vsel %vm1733, %v1726, 920167782
        %v1740 = vsel %vm1732, %v1723, %v1739
        %v1741 = vsel %vm1731, %v1738, %v1740
        %v1742 = vsel %vm1730, %v1720, %v1723
        %v1743 = vsel %vm1733, %v1729, 1326507024
        %v1744 = vsel %vm1732, %v1726, %v1743
        %v1745 = vsel %vm1731, %v1742, %v1744
        %v1746 = vshll.u32 %v1706, 8
        %v1747 = vmul.u32.u64.compose %v1746, %v1745
        %v1748 = vextract.low.u32 %v1747
        %v1749 = vextract.high.u32 %v1747
        %v1750 = vmul.u32.u64.compose %v1746, %v1741
        %v1751 = vextract.low.u32 %v1750
        %v1752 = vextract.high.u32 %v1750
        %v1753 = vmul.u32 %v1746, %v1737
        %v1754 = vadd.s32 %v1749, %v1751
        %vm1755 = vc.u32 %v1749, %v1751
        %v1756 = vadd.s32 %v1752, 1
        %v1757 = vsel %vm1755, %v1756, %v1752
        %v1758 = vadd.s32 %v1753, %v1757
        %v1759 = vadd.s32 %v1758, 536870912
        %v1760 = vshrl.u32 %v1759, 30
        %v1761 = vshll.u32 %v1760, 30
        %v1762 = vsub.s32 %v1758, %v1761
        %vm1763 = vcmp.lt.s32.totalorder %v1762, 0
        %v1764 = vsub.s32 0, %v1762
        %v1765 = vsel %vm1763, %v1764, %v1762
        %v1766 = vclz %v1765
        %v1767 = vsub.s32 %v1766, 2
        %vm1768 = vcmp.gt.s32.totalorder 0, %v1767
        %v1769 = vsel %vm1768, 0, %v1767
        %v1770 = vsub.s32 32, %v1769
        %v1771 = vshll.u32 %v1762, %v1769
        %v1772 = vshrl.u32 %v1754, %v1770
        %v1773 = vor.u32 %v1771, %v1772
        %v1774 = vsub.s32 4294967266, %v1769
        %v1775 = vadd.s32 %v1774, 127
        %v1776 = vshll.u32 %v1775, 23
        %v1777 = vor.u32 4788187, %v1776
        %v1778 = vand.u32 2147483647, %v1777
        %v1780 = vcvt.s32.f32 %v1773
        %v1781 = vmul.f32 %v1780, %v1778
        %v1782 = vxor.u32 %v1781, 2147483648
        %v1783 = vsel %vm1700, %v1782, %v1781
        %v1784 = vsub.s32 4, %v1760
        %v1785 = vsel %vm1700, %v1784, %v1760
        %v1786 = vsel %vm1699, %v1694, %v1783
        %v1787 = vsel %vm1699, 0, %v1785
        %v1788 = vcosq.f32.pop %v1786
        %v1789 = vsinq.f32.pop %v1786
        %vm1790 = vweird.f32 %v1694
        %v1791 = vadd.s32 %v1787, 3
        %v1792 = vand.u32 %v1791, 3
        %vm1793 = vcmp.lt.s32.totalorder %v1792, 2
        %vm1794 = vcmp.eq.s32.totalorder %v1792, 0
        %v1795 = vxor.u32 %v1789, 2147483648
        %v1796 = vsel %vm1794, %v1788, %v1795
        %vm1797 = vcmp.eq.s32.totalorder %v1792, 2
        %v1798 = vxor.u32 %v1788, 2147483648
        %v1799 = vsel %vm1797, %v1798, %v1789
        %v1800 = vsel %vm1793, %v1796, %v1799
        %v1801 = vsel %vm1790, nan, %v1800
        %v1802 = vand.u32 2147483647, %v1695
        %vm1803 = vcmp.le.f32.partialorder %v1802, 0.7853982
        %vm1804 = vcmp.lt.s32.totalorder %v1695, 0
        %v1805 = vand.u32 %v1695, 2139095040
        %v1806 = vshrl.u32 %v1805, 23
        %v1807 = vsub.s32 %v1806, 127
        %v1808 = vand.u32 2147483647, %v1695
        %v1809 = vand.u32 %v1808, 8388607
        %v1810 = vor.u32 %v1809, 8388608
        %v1811 = vsub.s32 0, %v1810
        %v1812 = vadd.s32 %v1807, 1
        %vm1813 = vcmp.gt.s32.totalorder %v1812, 0
        %v1814 = vsel %vm1813, %v1812, 0
        %v1815 = vshrl.u32 %v1814, 5
        %v1816 = vand.u32 %v1814, 31
        %v1817 = vsub.s32 32, %v1816
        %v1818 = vshrl.u32 683565275, %v1817
        %v1819 = vshll.u32 683565275, %v1816
        %v1820 = vshrl.u32 2475754826, %v1817
        %v1821 = vor.u32 %v1819, %v1820
        %v1822 = vshll.u32 2475754826, %v1816
        %v1823 = vshrl.u32 2131351028, %v1817
        %v1824 = vor.u32 %v1822, %v1823
        %v1825 = vshll.u32 2131351028, %v1816
        %v1826 = vshrl.u32 2102212464, %v1817
        %v1827 = vor.u32 %v1825, %v1826
        %v1828 = vshll.u32 2102212464, %v1816
        %v1829 = vshrl.u32 920167782, %v1817
        %v1830 = vor.u32 %v1828, %v1829
        %v1831 = vshll.u32 920167782, %v1816
        %v1832 = vshrl.u32 1326507024, %v1817
        %v1833 = vor.u32 %v1831, %v1832
        %vm1834 = vcmp.lt.s32.totalorder %v1815, 1
        %vm1835 = vcmp.lt.s32.totalorder %v1815, 2
        %vm1836 = vcmp.lt.s32.totalorder %v1815, 3
        %vm1837 = vcmp.lt.s32.totalorder %v1815, 4
        %v1838 = vsel %vm1834, %v1818, %v1821
        %v1839 = vsel %vm1837, %v1827, 2102212464
        %v1840 = vsel %vm1836, %v1824, %v1839
        %v1841 = vsel %vm1835, %v1838, %v1840
        %v1842 = vsel %vm1834, %v1821, %v1824
        %v1843 = vsel %vm1837, %v1830, 920167782
        %v1844 = vsel %vm1836, %v1827, %v1843
        %v1845 = vsel %vm1835, %v1842, %v1844
        %v1846 = vsel %vm1834, %v1824, %v1827
        %v1847 = vsel %vm1837, %v1833, 1326507024
        %v1848 = vsel %vm1836, %v1830, %v1847
        %v1849 = vsel %vm1835, %v1846, %v1848
        %v1850 = vshll.u32 %v1810, 8
        %v1851 = vmul.u32.u64.compose %v1850, %v1849
        %v1852 = vextract.low.u32 %v1851
        %v1853 = vextract.high.u32 %v1851
        %v1854 = vmul.u32.u64.compose %v1850, %v1845
        %v1855 = vextract.low.u32 %v1854
        %v1856 = vextract.high.u32 %v1854
        %v1857 = vmul.u32 %v1850, %v1841
        %v1858 = vadd.s32 %v1853, %v1855
        %vm1859 = vc.u32 %v1853, %v1855
        %v1860 = vadd.s32 %v1856, 1
        %v1861 = vsel %vm1859, %v1860, %v1856
        %v1862 = vadd.s32 %v1857, %v1861
        %v1863 = vadd.s32 %v1862, 536870912
        %v1864 = vshrl.u32 %v1863, 30
        %v1865 = vshll.u32 %v1864, 30
        %v1866 = vsub.s32 %v1862, %v1865
        %vm1867 = vcmp.lt.s32.totalorder %v1866, 0
        %v1868 = vsub.s32 0, %v1866
        %v1869 = vsel %vm1867, %v1868, %v1866
        %v1870 = vclz %v1869
        %v1871 = vsub.s32 %v1870, 2
        %vm1872 = vcmp.gt.s32.totalorder 0, %v1871
        %v1873 = vsel %vm1872, 0, %v1871
        %v1874 = vsub.s32 32, %v1873
        %v1875 = vshll.u32 %v1866, %v1873
        %v1876 = vshrl.u32 %v1858, %v1874
        %v1877 = vor.u32 %v1875, %v1876
        %v1878 = vsub.s32 4294967266, %v1873
        %v1879 = vadd.s32 %v1878, 127
        %v1880 = vshll.u32 %v1879, 23
        %v1881 = vor.u32 4788187, %v1880
        %v1882 = vand.u32 2147483647, %v1881
        %v1884 = vcvt.s32.f32 %v1877
        %v1885 = vmul.f32 %v1884, %v1882
        %v1886 = vxor.u32 %v1885, 2147483648
        %v1887 = vsel %vm1804, %v1886, %v1885
        %v1888 = vsub.s32 4, %v1864
        %v1889 = vsel %vm1804, %v1888, %v1864
        %v1890 = vsel %vm1803, %v1695, %v1887
        %v1891 = vsel %vm1803, 0, %v1889
        %v1892 = vcosq.f32.pop %v1890
        %v1893 = vsinq.f32.pop %v1890
        %vm1894 = vweird.f32 %v1695
        %v1895 = vadd.s32 %v1891, 3
        %v1896 = vand.u32 %v1895, 3
        %vm1897 = vcmp.lt.s32.totalorder %v1896, 2
        %vm1898 = vcmp.eq.s32.totalorder %v1896, 0
        %v1899 = vxor.u32 %v1893, 2147483648
        %v1900 = vsel %vm1898, %v1892, %v1899
        %vm1901 = vcmp.eq.s32.totalorder %v1896, 2
        %v1902 = vxor.u32 %v1892, 2147483648
        %v1903 = vsel %vm1901, %v1902, %v1893
        %v1904 = vsel %vm1897, %v1900, %v1903
        %v1905 = vsel %vm1894, nan, %v1904
        %v1906 = vand.u32 2147483647, %v1696
        %vm1907 = vcmp.le.f32.partialorder %v1906, 0.7853982
        %vm1908 = vcmp.lt.s32.totalorder %v1696, 0
        %v1909 = vand.u32 %v1696, 2139095040
        %v1910 = vshrl.u32 %v1909, 23
        %v1911 = vsub.s32 %v1910, 127
        %v1912 = vand.u32 2147483647, %v1696
        %v1913 = vand.u32 %v1912, 8388607
        %v1914 = vor.u32 %v1913, 8388608
        %v1915 = vsub.s32 0, %v1914
        %v1916 = vadd.s32 %v1911, 1
        %vm1917 = vcmp.gt.s32.totalorder %v1916, 0
        %v1918 = vsel %vm1917, %v1916, 0
        %v1919 = vshrl.u32 %v1918, 5
        %v1920 = vand.u32 %v1918, 31
        %v1921 = vsub.s32 32, %v1920
        %v1922 = vshrl.u32 683565275, %v1921
        %v1923 = vshll.u32 683565275, %v1920
        %v1924 = vshrl.u32 2475754826, %v1921
        %v1925 = vor.u32 %v1923, %v1924
        %v1926 = vshll.u32 2475754826, %v1920
        %v1927 = vshrl.u32 2131351028, %v1921
        %v1928 = vor.u32 %v1926, %v1927
        %v1929 = vshll.u32 2131351028, %v1920
        %v1930 = vshrl.u32 2102212464, %v1921
        %v1931 = vor.u32 %v1929, %v1930
        %v1932 = vshll.u32 2102212464, %v1920
        %v1933 = vshrl.u32 920167782, %v1921
        %v1934 = vor.u32 %v1932, %v1933
        %v1935 = vshll.u32 920167782, %v1920
        %v1936 = vshrl.u32 1326507024, %v1921
        %v1937 = vor.u32 %v1935, %v1936
        %vm1938 = vcmp.lt.s32.totalorder %v1919, 1
        %vm1939 = vcmp.lt.s32.totalorder %v1919, 2
        %vm1940 = vcmp.lt.s32.totalorder %v1919, 3
        %vm1941 = vcmp.lt.s32.totalorder %v1919, 4
        %v1942 = vsel %vm1938, %v1922, %v1925
        %v1943 = vsel %vm1941, %v1931, 2102212464
        %v1944 = vsel %vm1940, %v1928, %v1943
        %v1945 = vsel %vm1939, %v1942, %v1944
        %v1946 = vsel %vm1938, %v1925, %v1928
        %v1947 = vsel %vm1941, %v1934, 920167782
        %v1948 = vsel %vm1940, %v1931, %v1947
        %v1949 = vsel %vm1939, %v1946, %v1948
        %v1950 = vsel %vm1938, %v1928, %v1931
        %v1951 = vsel %vm1941, %v1937, 1326507024
        %v1952 = vsel %vm1940, %v1934, %v1951
        %v1953 = vsel %vm1939, %v1950, %v1952
        %v1954 = vshll.u32 %v1914, 8
        %v1955 = vmul.u32.u64.compose %v1954, %v1953
        %v1956 = vextract.low.u32 %v1955
        %v1957 = vextract.high.u32 %v1955
        %v1958 = vmul.u32.u64.compose %v1954, %v1949
        %v1959 = vextract.low.u32 %v1958
        %v1960 = vextract.high.u32 %v1958
        %v1961 = vmul.u32 %v1954, %v1945
        %v1962 = vadd.s32 %v1957, %v1959
        %vm1963 = vc.u32 %v1957, %v1959
        %v1964 = vadd.s32 %v1960, 1
        %v1965 = vsel %vm1963, %v1964, %v1960
        %v1966 = vadd.s32 %v1961, %v1965
        %v1967 = vadd.s32 %v1966, 536870912
        %v1968 = vshrl.u32 %v1967, 30
        %v1969 = vshll.u32 %v1968, 30
        %v1970 = vsub.s32 %v1966, %v1969
        %vm1971 = vcmp.lt.s32.totalorder %v1970, 0
        %v1972 = vsub.s32 0, %v1970
        %v1973 = vsel %vm1971, %v1972, %v1970
        %v1974 = vclz %v1973
        %v1975 = vsub.s32 %v1974, 2
        %vm1976 = vcmp.gt.s32.totalorder 0, %v1975
        %v1977 = vsel %vm1976, 0, %v1975
        %v1978 = vsub.s32 32, %v1977
        %v1979 = vshll.u32 %v1970, %v1977
        %v1980 = vshrl.u32 %v1962, %v1978
        %v1981 = vor.u32 %v1979, %v1980
        %v1982 = vsub.s32 4294967266, %v1977
        %v1983 = vadd.s32 %v1982, 127
        %v1984 = vshll.u32 %v1983, 23
        %v1985 = vor.u32 4788187, %v1984
        %v1986 = vand.u32 2147483647, %v1985
        %v1988 = vcvt.s32.f32 %v1981
        %v1989 = vmul.f32 %v1988, %v1986
        %v1990 = vxor.u32 %v1989, 2147483648
        %v1991 = vsel %vm1908, %v1990, %v1989
        %v1992 = vsub.s32 4, %v1968
        %v1993 = vsel %vm1908, %v1992, %v1968
        %v1994 = vsel %vm1907, %v1696, %v1991
        %v1995 = vsel %vm1907, 0, %v1993
        %v1996 = vcosq.f32.pop %v1994
        %v1997 = vsinq.f32.pop %v1994
        %vm1998 = vweird.f32 %v1696
        %v1999 = vadd.s32 %v1995, 3
        %v2000 = vand.u32 %v1999, 3
        %vm2001 = vcmp.lt.s32.totalorder %v2000, 2
        %vm2002 = vcmp.eq.s32.totalorder %v2000, 0
        %v2003 = vxor.u32 %v1997, 2147483648
        %v2004 = vsel %vm2002, %v1996, %v2003
        %vm2005 = vcmp.eq.s32.totalorder %v2000, 2
        %v2006 = vxor.u32 %v1996, 2147483648
        %v2007 = vsel %vm2005, %v2006, %v1997
        %v2008 = vsel %vm2001, %v2004, %v2007
        %v2009 = vsel %vm1998, nan, %v2008
        %v2010 = vand.u32 2147483647, %v1697
        %vm2011 = vcmp.le.f32.partialorder %v2010, 0.7853982
        %vm2012 = vcmp.lt.s32.totalorder %v1697, 0
        %v2013 = vand.u32 %v1697, 2139095040
        %v2014 = vshrl.u32 %v2013, 23
        %v2015 = vsub.s32 %v2014, 127
        %v2016 = vand.u32 2147483647, %v1697
        %v2017 = vand.u32 %v2016, 8388607
        %v2018 = vor.u32 %v2017, 8388608
        %v2019 = vsub.s32 0, %v2018
        %v2020 = vadd.s32 %v2015, 1
        %vm2021 = vcmp.gt.s32.totalorder %v2020, 0
        %v2022 = vsel %vm2021, %v2020, 0
        %v2023 = vshrl.u32 %v2022, 5
        %v2024 = vand.u32 %v2022, 31
        %v2025 = vsub.s32 32, %v2024
        %v2026 = vshrl.u32 683565275, %v2025
        %v2027 = vshll.u32 683565275, %v2024
        %v2028 = vshrl.u32 2475754826, %v2025
        %v2029 = vor.u32 %v2027, %v2028
        %v2030 = vshll.u32 2475754826, %v2024
        %v2031 = vshrl.u32 2131351028, %v2025
        %v2032 = vor.u32 %v2030, %v2031
        %v2033 = vshll.u32 2131351028, %v2024
        %v2034 = vshrl.u32 2102212464, %v2025
        %v2035 = vor.u32 %v2033, %v2034
        %v2036 = vshll.u32 2102212464, %v2024
        %v2037 = vshrl.u32 920167782, %v2025
        %v2038 = vor.u32 %v2036, %v2037
        %v2039 = vshll.u32 920167782, %v2024
        %v2040 = vshrl.u32 1326507024, %v2025
        %v2041 = vor.u32 %v2039, %v2040
        %vm2042 = vcmp.lt.s32.totalorder %v2023, 1
        %vm2043 = vcmp.lt.s32.totalorder %v2023, 2
        %vm2044 = vcmp.lt.s32.totalorder %v2023, 3
        %vm2045 = vcmp.lt.s32.totalorder %v2023, 4
        %v2046 = vsel %vm2042, %v2026, %v2029
        %v2047 = vsel %vm2045, %v2035, 2102212464
        %v2048 = vsel %vm2044, %v2032, %v2047
        %v2049 = vsel %vm2043, %v2046, %v2048
        %v2050 = vsel %vm2042, %v2029, %v2032
        %v2051 = vsel %vm2045, %v2038, 920167782
        %v2052 = vsel %vm2044, %v2035, %v2051
        %v2053 = vsel %vm2043, %v2050, %v2052
        %v2054 = vsel %vm2042, %v2032, %v2035
        %v2055 = vsel %vm2045, %v2041, 1326507024
        %v2056 = vsel %vm2044, %v2038, %v2055
        %v2057 = vsel %vm2043, %v2054, %v2056
        %v2058 = vshll.u32 %v2018, 8
        %v2059 = vmul.u32.u64.compose %v2058, %v2057
        %v2060 = vextract.low.u32 %v2059
        %v2061 = vextract.high.u32 %v2059
        %v2062 = vmul.u32.u64.compose %v2058, %v2053
        %v2063 = vextract.low.u32 %v2062
        %v2064 = vextract.high.u32 %v2062
        %v2065 = vmul.u32 %v2058, %v2049
        %v2066 = vadd.s32 %v2061, %v2063
        %vm2067 = vc.u32 %v2061, %v2063
        %v2068 = vadd.s32 %v2064, 1
        %v2069 = vsel %vm2067, %v2068, %v2064
        %v2070 = vadd.s32 %v2065, %v2069
        %v2071 = vadd.s32 %v2070, 536870912
        %v2072 = vshrl.u32 %v2071, 30
        %v2073 = vshll.u32 %v2072, 30
        %v2074 = vsub.s32 %v2070, %v2073
        %vm2075 = vcmp.lt.s32.totalorder %v2074, 0
        %v2076 = vsub.s32 0, %v2074
        %v2077 = vsel %vm2075, %v2076, %v2074
        %v2078 = vclz %v2077
        %v2079 = vsub.s32 %v2078, 2
        %vm2080 = vcmp.gt.s32.totalorder 0, %v2079
        %v2081 = vsel %vm2080, 0, %v2079
        %v2082 = vsub.s32 32, %v2081
        %v2083 = vshll.u32 %v2074, %v2081
        %v2084 = vshrl.u32 %v2066, %v2082
        %v2085 = vor.u32 %v2083, %v2084
        %v2086 = vsub.s32 4294967266, %v2081
        %v2087 = vadd.s32 %v2086, 127
        %v2088 = vshll.u32 %v2087, 23
        %v2089 = vor.u32 4788187, %v2088
        %v2090 = vand.u32 2147483647, %v2089
        %v2092 = vcvt.s32.f32 %v2085
        %v2093 = vmul.f32 %v2092, %v2090
        %v2094 = vxor.u32 %v2093, 2147483648
        %v2095 = vsel %vm2012, %v2094, %v2093
        %v2096 = vsub.s32 4, %v2072
        %v2097 = vsel %vm2012, %v2096, %v2072
        %v2098 = vsel %vm2011, %v1697, %v2095
        %v2099 = vsel %vm2011, 0, %v2097
        %v2100 = vcosq.f32.pop %v2098
        %v2101 = vsinq.f32.pop %v2098
        %vm2102 = vweird.f32 %v1697
        %v2103 = vadd.s32 %v2099, 3
        %v2104 = vand.u32 %v2103, 3
        %vm2105 = vcmp.lt.s32.totalorder %v2104, 2
        %vm2106 = vcmp.eq.s32.totalorder %v2104, 0
        %v2107 = vxor.u32 %v2101, 2147483648
        %v2108 = vsel %vm2106, %v2100, %v2107
        %vm2109 = vcmp.eq.s32.totalorder %v2104, 2
        %v2110 = vxor.u32 %v2100, 2147483648
        %v2111 = vsel %vm2109, %v2110, %v2101
        %v2112 = vsel %vm2105, %v2108, %v2111
        %v2113 = vsel %vm2102, nan, %v2112
        %v2114 = vmul.f32 %v1654, %v1801
        %v2115 = vmul.f32 %v1655, %v1905
        %v2116 = vmul.f32 %v1656, %v2009
        %v2117 = vmul.f32 %v1657, %v2113
        %v2118 = vsub.f32 1.0, %v1654
        %v2119 = vsub.f32 1.0, %v1655
        %v2120 = vsub.f32 1.0, %v1656
        %v2121 = vsub.f32 1.0, %v1657
        %v2122 = vmul.f32 %v2118, %v1694
        %v2123 = vmul.f32 %v2119, %v1695
        %v2124 = vmul.f32 %v2120, %v1696
        %v2125 = vmul.f32 %v2121, %v1697
        %v2126 = vadd.f32 %v2114, %v2122
        %v2127 = vadd.f32 %v2115, %v2123
        %v2128 = vadd.f32 %v2116, %v2124
        %v2129 = vadd.f32 %v2117, %v2125
        %v2130 = vand.u32 2147483647, %v2126
        %vm2131 = vcmp.le.f32.partialorder %v2130, 0.7853982
        %vm2132 = vcmp.lt.s32.totalorder %v2126, 0
        %v2133 = vand.u32 %v2126, 2139095040
        %v2134 = vshrl.u32 %v2133, 23
        %v2135 = vsub.s32 %v2134, 127
        %v2136 = vand.u32 2147483647, %v2126
        %v2137 = vand.u32 %v2136, 8388607
        %v2138 = vor.u32 %v2137, 8388608
        %v2139 = vsub.s32 0, %v2138
        %v2140 = vadd.s32 %v2135, 1
        %vm2141 = vcmp.gt.s32.totalorder %v2140, 0
        %v2142 = vsel %vm2141, %v2140, 0
        %v2143 = vshrl.u32 %v2142, 5
        %v2144 = vand.u32 %v2142, 31
        %v2145 = vsub.s32 32, %v2144
        %v2146 = vshrl.u32 683565275, %v2145
        %v2147 = vshll.u32 683565275, %v2144
        %v2148 = vshrl.u32 2475754826, %v2145
        %v2149 = vor.u32 %v2147, %v2148
        %v2150 = vshll.u32 2475754826, %v2144
        %v2151 = vshrl.u32 2131351028, %v2145
        %v2152 = vor.u32 %v2150, %v2151
        %v2153 = vshll.u32 2131351028, %v2144
        %v2154 = vshrl.u32 2102212464, %v2145
        %v2155 = vor.u32 %v2153, %v2154
        %v2156 = vshll.u32 2102212464, %v2144
        %v2157 = vshrl.u32 920167782, %v2145
        %v2158 = vor.u32 %v2156, %v2157
        %v2159 = vshll.u32 920167782, %v2144
        %v2160 = vshrl.u32 1326507024, %v2145
        %v2161 = vor.u32 %v2159, %v2160
        %vm2162 = vcmp.lt.s32.totalorder %v2143, 1
        %vm2163 = vcmp.lt.s32.totalorder %v2143, 2
        %vm2164 = vcmp.lt.s32.totalorder %v2143, 3
        %vm2165 = vcmp.lt.s32.totalorder %v2143, 4
        %v2166 = vsel %vm2162, %v2146, %v2149
        %v2167 = vsel %vm2165, %v2155, 2102212464
        %v2168 = vsel %vm2164, %v2152, %v2167
        %v2169 = vsel %vm2163, %v2166, %v2168
        %v2170 = vsel %vm2162, %v2149, %v2152
        %v2171 = vsel %vm2165, %v2158, 920167782
        %v2172 = vsel %vm2164, %v2155, %v2171
        %v2173 = vsel %vm2163, %v2170, %v2172
        %v2174 = vsel %vm2162, %v2152, %v2155
        %v2175 = vsel %vm2165, %v2161, 1326507024
        %v2176 = vsel %vm2164, %v2158, %v2175
        %v2177 = vsel %vm2163, %v2174, %v2176
        %v2178 = vshll.u32 %v2138, 8
        %v2179 = vmul.u32.u64.compose %v2178, %v2177
        %v2180 = vextract.low.u32 %v2179
        %v2181 = vextract.high.u32 %v2179
        %v2182 = vmul.u32.u64.compose %v2178, %v2173
        %v2183 = vextract.low.u32 %v2182
        %v2184 = vextract.high.u32 %v2182
        %v2185 = vmul.u32 %v2178, %v2169
        %v2186 = vadd.s32 %v2181, %v2183
        %vm2187 = vc.u32 %v2181, %v2183
        %v2188 = vadd.s32 %v2184, 1
        %v2189 = vsel %vm2187, %v2188, %v2184
        %v2190 = vadd.s32 %v2185, %v2189
        %v2191 = vadd.s32 %v2190, 536870912
        %v2192 = vshrl.u32 %v2191, 30
        %v2193 = vshll.u32 %v2192, 30
        %v2194 = vsub.s32 %v2190, %v2193
        %vm2195 = vcmp.lt.s32.totalorder %v2194, 0
        %v2196 = vsub.s32 0, %v2194
        %v2197 = vsel %vm2195, %v2196, %v2194
        %v2198 = vclz %v2197
        %v2199 = vsub.s32 %v2198, 2
        %vm2200 = vcmp.gt.s32.totalorder 0, %v2199
        %v2201 = vsel %vm2200, 0, %v2199
        %v2202 = vsub.s32 32, %v2201
        %v2203 = vshll.u32 %v2194, %v2201
        %v2204 = vshrl.u32 %v2186, %v2202
        %v2205 = vor.u32 %v2203, %v2204
        %v2206 = vsub.s32 4294967266, %v2201
        %v2207 = vadd.s32 %v2206, 127
        %v2208 = vshll.u32 %v2207, 23
        %v2209 = vor.u32 4788187, %v2208
        %v2210 = vand.u32 2147483647, %v2209
        %v2212 = vcvt.s32.f32 %v2205
        %v2213 = vmul.f32 %v2212, %v2210
        %v2214 = vxor.u32 %v2213, 2147483648
        %v2215 = vsel %vm2132, %v2214, %v2213
        %v2216 = vsub.s32 4, %v2192
        %v2217 = vsel %vm2132, %v2216, %v2192
        %v2218 = vsel %vm2131, %v2126, %v2215
        %v2219 = vsel %vm2131, 0, %v2217
        %v2220 = vcosq.f32.pop %v2218
        %v2221 = vsinq.f32.pop %v2218
        %vm2222 = vweird.f32 %v2126
        %v2223 = vand.u32 %v2219, 3
        %vm2224 = vcmp.lt.s32.totalorder %v2223, 2
        %vm2225 = vcmp.eq.s32.totalorder %v2223, 0
        %v2226 = vxor.u32 %v2221, 2147483648
        %v2227 = vsel %vm2225, %v2220, %v2226
        %vm2228 = vcmp.eq.s32.totalorder %v2223, 2
        %v2229 = vxor.u32 %v2220, 2147483648
        %v2230 = vsel %vm2228, %v2229, %v2221
        %v2231 = vsel %vm2224, %v2227, %v2230
        %v2232 = vsel %vm2222, nan, %v2231
        %v2233 = vand.u32 2147483647, %v2127
        %vm2234 = vcmp.le.f32.partialorder %v2233, 0.7853982
        %vm2235 = vcmp.lt.s32.totalorder %v2127, 0
        %v2236 = vand.u32 %v2127, 2139095040
        %v2237 = vshrl.u32 %v2236, 23
        %v2238 = vsub.s32 %v2237, 127
        %v2239 = vand.u32 2147483647, %v2127
        %v2240 = vand.u32 %v2239, 8388607
        %v2241 = vor.u32 %v2240, 8388608
        %v2242 = vsub.s32 0, %v2241
        %v2243 = vadd.s32 %v2238, 1
        %vm2244 = vcmp.gt.s32.totalorder %v2243, 0
        %v2245 = vsel %vm2244, %v2243, 0
        %v2246 = vshrl.u32 %v2245, 5
        %v2247 = vand.u32 %v2245, 31
        %v2248 = vsub.s32 32, %v2247
        %v2249 = vshrl.u32 683565275, %v2248
        %v2250 = vshll.u32 683565275, %v2247
        %v2251 = vshrl.u32 2475754826, %v2248
        %v2252 = vor.u32 %v2250, %v2251
        %v2253 = vshll.u32 2475754826, %v2247
        %v2254 = vshrl.u32 2131351028, %v2248
        %v2255 = vor.u32 %v2253, %v2254
        %v2256 = vshll.u32 2131351028, %v2247
        %v2257 = vshrl.u32 2102212464, %v2248
        %v2258 = vor.u32 %v2256, %v2257
        %v2259 = vshll.u32 2102212464, %v2247
        %v2260 = vshrl.u32 920167782, %v2248
        %v2261 = vor.u32 %v2259, %v2260
        %v2262 = vshll.u32 920167782, %v2247
        %v2263 = vshrl.u32 1326507024, %v2248
        %v2264 = vor.u32 %v2262, %v2263
        %vm2265 = vcmp.lt.s32.totalorder %v2246, 1
        %vm2266 = vcmp.lt.s32.totalorder %v2246, 2
        %vm2267 = vcmp.lt.s32.totalorder %v2246, 3
        %vm2268 = vcmp.lt.s32.totalorder %v2246, 4
        %v2269 = vsel %vm2265, %v2249, %v2252
        %v2270 = vsel %vm2268, %v2258, 2102212464
        %v2271 = vsel %vm2267, %v2255, %v2270
        %v2272 = vsel %vm2266, %v2269, %v2271
        %v2273 = vsel %vm2265, %v2252, %v2255
        %v2274 = vsel %vm2268, %v2261, 920167782
        %v2275 = vsel %vm2267, %v2258, %v2274
        %v2276 = vsel %vm2266, %v2273, %v2275
        %v2277 = vsel %vm2265, %v2255, %v2258
        %v2278 = vsel %vm2268, %v2264, 1326507024
        %v2279 = vsel %vm2267, %v2261, %v2278
        %v2280 = vsel %vm2266, %v2277, %v2279
        %v2281 = vshll.u32 %v2241, 8
        %v2282 = vmul.u32.u64.compose %v2281, %v2280
        %v2283 = vextract.low.u32 %v2282
        %v2284 = vextract.high.u32 %v2282
        %v2285 = vmul.u32.u64.compose %v2281, %v2276
        %v2286 = vextract.low.u32 %v2285
        %v2287 = vextract.high.u32 %v2285
        %v2288 = vmul.u32 %v2281, %v2272
        %v2289 = vadd.s32 %v2284, %v2286
        %vm2290 = vc.u32 %v2284, %v2286
        %v2291 = vadd.s32 %v2287, 1
        %v2292 = vsel %vm2290, %v2291, %v2287
        %v2293 = vadd.s32 %v2288, %v2292
        %v2294 = vadd.s32 %v2293, 536870912
        %v2295 = vshrl.u32 %v2294, 30
        %v2296 = vshll.u32 %v2295, 30
        %v2297 = vsub.s32 %v2293, %v2296
        %vm2298 = vcmp.lt.s32.totalorder %v2297, 0
        %v2299 = vsub.s32 0, %v2297
        %v2300 = vsel %vm2298, %v2299, %v2297
        %v2301 = vclz %v2300
        %v2302 = vsub.s32 %v2301, 2
        %vm2303 = vcmp.gt.s32.totalorder 0, %v2302
        %v2304 = vsel %vm2303, 0, %v2302
        %v2305 = vsub.s32 32, %v2304
        %v2306 = vshll.u32 %v2297, %v2304
        %v2307 = vshrl.u32 %v2289, %v2305
        %v2308 = vor.u32 %v2306, %v2307
        %v2309 = vsub.s32 4294967266, %v2304
        %v2310 = vadd.s32 %v2309, 127
        %v2311 = vshll.u32 %v2310, 23
        %v2312 = vor.u32 4788187, %v2311
        %v2313 = vand.u32 2147483647, %v2312
        %v2315 = vcvt.s32.f32 %v2308
        %v2316 = vmul.f32 %v2315, %v2313
        %v2317 = vxor.u32 %v2316, 2147483648
        %v2318 = vsel %vm2235, %v2317, %v2316
        %v2319 = vsub.s32 4, %v2295
        %v2320 = vsel %vm2235, %v2319, %v2295
        %v2321 = vsel %vm2234, %v2127, %v2318
        %v2322 = vsel %vm2234, 0, %v2320
        %v2323 = vcosq.f32.pop %v2321
        %v2324 = vsinq.f32.pop %v2321
        %vm2325 = vweird.f32 %v2127
        %v2326 = vand.u32 %v2322, 3
        %vm2327 = vcmp.lt.s32.totalorder %v2326, 2
        %vm2328 = vcmp.eq.s32.totalorder %v2326, 0
        %v2329 = vxor.u32 %v2324, 2147483648
        %v2330 = vsel %vm2328, %v2323, %v2329
        %vm2331 = vcmp.eq.s32.totalorder %v2326, 2
        %v2332 = vxor.u32 %v2323, 2147483648
        %v2333 = vsel %vm2331, %v2332, %v2324
        %v2334 = vsel %vm2327, %v2330, %v2333
        %v2335 = vsel %vm2325, nan, %v2334
        %v2336 = vand.u32 2147483647, %v2128
        %vm2337 = vcmp.le.f32.partialorder %v2336, 0.7853982
        %vm2338 = vcmp.lt.s32.totalorder %v2128, 0
        %v2339 = vand.u32 %v2128, 2139095040
        %v2340 = vshrl.u32 %v2339, 23
        %v2341 = vsub.s32 %v2340, 127
        %v2342 = vand.u32 2147483647, %v2128
        %v2343 = vand.u32 %v2342, 8388607
        %v2344 = vor.u32 %v2343, 8388608
        %v2345 = vsub.s32 0, %v2344
        %v2346 = vadd.s32 %v2341, 1
        %vm2347 = vcmp.gt.s32.totalorder %v2346, 0
        %v2348 = vsel %vm2347, %v2346, 0
        %v2349 = vshrl.u32 %v2348, 5
        %v2350 = vand.u32 %v2348, 31
        %v2351 = vsub.s32 32, %v2350
        %v2352 = vshrl.u32 683565275, %v2351
        %v2353 = vshll.u32 683565275, %v2350
        %v2354 = vshrl.u32 2475754826, %v2351
        %v2355 = vor.u32 %v2353, %v2354
        %v2356 = vshll.u32 2475754826, %v2350
        %v2357 = vshrl.u32 2131351028, %v2351
        %v2358 = vor.u32 %v2356, %v2357
        %v2359 = vshll.u32 2131351028, %v2350
        %v2360 = vshrl.u32 2102212464, %v2351
        %v2361 = vor.u32 %v2359, %v2360
        %v2362 = vshll.u32 2102212464, %v2350
        %v2363 = vshrl.u32 920167782, %v2351
        %v2364 = vor.u32 %v2362, %v2363
        %v2365 = vshll.u32 920167782, %v2350
        %v2366 = vshrl.u32 1326507024, %v2351
        %v2367 = vor.u32 %v2365, %v2366
        %vm2368 = vcmp.lt.s32.totalorder %v2349, 1
        %vm2369 = vcmp.lt.s32.totalorder %v2349, 2
        %vm2370 = vcmp.lt.s32.totalorder %v2349, 3
        %vm2371 = vcmp.lt.s32.totalorder %v2349, 4
        %v2372 = vsel %vm2368, %v2352, %v2355
        %v2373 = vsel %vm2371, %v2361, 2102212464
        %v2374 = vsel %vm2370, %v2358, %v2373
        %v2375 = vsel %vm2369, %v2372, %v2374
        %v2376 = vsel %vm2368, %v2355, %v2358
        %v2377 = vsel %vm2371, %v2364, 920167782
        %v2378 = vsel %vm2370, %v2361, %v2377
        %v2379 = vsel %vm2369, %v2376, %v2378
        %v2380 = vsel %vm2368, %v2358, %v2361
        %v2381 = vsel %vm2371, %v2367, 1326507024
        %v2382 = vsel %vm2370, %v2364, %v2381
        %v2383 = vsel %vm2369, %v2380, %v2382
        %v2384 = vshll.u32 %v2344, 8
        %v2385 = vmul.u32.u64.compose %v2384, %v2383
        %v2386 = vextract.low.u32 %v2385
        %v2387 = vextract.high.u32 %v2385
        %v2388 = vmul.u32.u64.compose %v2384, %v2379
        %v2389 = vextract.low.u32 %v2388
        %v2390 = vextract.high.u32 %v2388
        %v2391 = vmul.u32 %v2384, %v2375
        %v2392 = vadd.s32 %v2387, %v2389
        %vm2393 = vc.u32 %v2387, %v2389
        %v2394 = vadd.s32 %v2390, 1
        %v2395 = vsel %vm2393, %v2394, %v2390
        %v2396 = vadd.s32 %v2391, %v2395
        %v2397 = vadd.s32 %v2396, 536870912
        %v2398 = vshrl.u32 %v2397, 30
        %v2399 = vshll.u32 %v2398, 30
        %v2400 = vsub.s32 %v2396, %v2399
        %vm2401 = vcmp.lt.s32.totalorder %v2400, 0
        %v2402 = vsub.s32 0, %v2400
        %v2403 = vsel %vm2401, %v2402, %v2400
        %v2404 = vclz %v2403
        %v2405 = vsub.s32 %v2404, 2
        %vm2406 = vcmp.gt.s32.totalorder 0, %v2405
        %v2407 = vsel %vm2406, 0, %v2405
        %v2408 = vsub.s32 32, %v2407
        %v2409 = vshll.u32 %v2400, %v2407
        %v2410 = vshrl.u32 %v2392, %v2408
        %v2411 = vor.u32 %v2409, %v2410
        %v2412 = vsub.s32 4294967266, %v2407
        %v2413 = vadd.s32 %v2412, 127
        %v2414 = vshll.u32 %v2413, 23
        %v2415 = vor.u32 4788187, %v2414
        %v2416 = vand.u32 2147483647, %v2415
        %v2418 = vcvt.s32.f32 %v2411
        %v2419 = vmul.f32 %v2418, %v2416
        %v2420 = vxor.u32 %v2419, 2147483648
        %v2421 = vsel %vm2338, %v2420, %v2419
        %v2422 = vsub.s32 4, %v2398
        %v2423 = vsel %vm2338, %v2422, %v2398
        %v2424 = vsel %vm2337, %v2128, %v2421
        %v2425 = vsel %vm2337, 0, %v2423
        %v2426 = vcosq.f32.pop %v2424
        %v2427 = vsinq.f32.pop %v2424
        %vm2428 = vweird.f32 %v2128
        %v2429 = vand.u32 %v2425, 3
        %vm2430 = vcmp.lt.s32.totalorder %v2429, 2
        %vm2431 = vcmp.eq.s32.totalorder %v2429, 0
        %v2432 = vxor.u32 %v2427, 2147483648
        %v2433 = vsel %vm2431, %v2426, %v2432
        %vm2434 = vcmp.eq.s32.totalorder %v2429, 2
        %v2435 = vxor.u32 %v2426, 2147483648
        %v2436 = vsel %vm2434, %v2435, %v2427
        %v2437 = vsel %vm2430, %v2433, %v2436
        %v2438 = vsel %vm2428, nan, %v2437
        %v2439 = vand.u32 2147483647, %v2129
        %vm2440 = vcmp.le.f32.partialorder %v2439, 0.7853982
        %vm2441 = vcmp.lt.s32.totalorder %v2129, 0
        %v2442 = vand.u32 %v2129, 2139095040
        %v2443 = vshrl.u32 %v2442, 23
        %v2444 = vsub.s32 %v2443, 127
        %v2445 = vand.u32 2147483647, %v2129
        %v2446 = vand.u32 %v2445, 8388607
        %v2447 = vor.u32 %v2446, 8388608
        %v2448 = vsub.s32 0, %v2447
        %v2449 = vadd.s32 %v2444, 1
        %vm2450 = vcmp.gt.s32.totalorder %v2449, 0
        %v2451 = vsel %vm2450, %v2449, 0
        %v2452 = vshrl.u32 %v2451, 5
        %v2453 = vand.u32 %v2451, 31
        %v2454 = vsub.s32 32, %v2453
        %v2455 = vshrl.u32 683565275, %v2454
        %v2456 = vshll.u32 683565275, %v2453
        %v2457 = vshrl.u32 2475754826, %v2454
        %v2458 = vor.u32 %v2456, %v2457
        %v2459 = vshll.u32 2475754826, %v2453
        %v2460 = vshrl.u32 2131351028, %v2454
        %v2461 = vor.u32 %v2459, %v2460
        %v2462 = vshll.u32 2131351028, %v2453
        %v2463 = vshrl.u32 2102212464, %v2454
        %v2464 = vor.u32 %v2462, %v2463
        %v2465 = vshll.u32 2102212464, %v2453
        %v2466 = vshrl.u32 920167782, %v2454
        %v2467 = vor.u32 %v2465, %v2466
        %v2468 = vshll.u32 920167782, %v2453
        %v2469 = vshrl.u32 1326507024, %v2454
        %v2470 = vor.u32 %v2468, %v2469
        %vm2471 = vcmp.lt.s32.totalorder %v2452, 1
        %vm2472 = vcmp.lt.s32.totalorder %v2452, 2
        %vm2473 = vcmp.lt.s32.totalorder %v2452, 3
        %vm2474 = vcmp.lt.s32.totalorder %v2452, 4
        %v2475 = vsel %vm2471, %v2455, %v2458
        %v2476 = vsel %vm2474, %v2464, 2102212464
        %v2477 = vsel %vm2473, %v2461, %v2476
        %v2478 = vsel %vm2472, %v2475, %v2477
        %v2479 = vsel %vm2471, %v2458, %v2461
        %v2480 = vsel %vm2474, %v2467, 920167782
        %v2481 = vsel %vm2473, %v2464, %v2480
        %v2482 = vsel %vm2472, %v2479, %v2481
        %v2483 = vsel %vm2471, %v2461, %v2464
        %v2484 = vsel %vm2474, %v2470, 1326507024
        %v2485 = vsel %vm2473, %v2467, %v2484
        %v2486 = vsel %vm2472, %v2483, %v2485
        %v2487 = vshll.u32 %v2447, 8
        %v2488 = vmul.u32.u64.compose %v2487, %v2486
        %v2489 = vextract.low.u32 %v2488
        %v2490 = vextract.high.u32 %v2488
        %v2491 = vmul.u32.u64.compose %v2487, %v2482
        %v2492 = vextract.low.u32 %v2491
        %v2493 = vextract.high.u32 %v2491
        %v2494 = vmul.u32 %v2487, %v2478
        %v2495 = vadd.s32 %v2490, %v2492
        %vm2496 = vc.u32 %v2490, %v2492
        %v2497 = vadd.s32 %v2493, 1
        %v2498 = vsel %vm2496, %v2497, %v2493
        %v2499 = vadd.s32 %v2494, %v2498
        %v2500 = vadd.s32 %v2499, 536870912
        %v2501 = vshrl.u32 %v2500, 30
        %v2502 = vshll.u32 %v2501, 30
        %v2503 = vsub.s32 %v2499, %v2502
        %vm2504 = vcmp.lt.s32.totalorder %v2503, 0
        %v2505 = vsub.s32 0, %v2503
        %v2506 = vsel %vm2504, %v2505, %v2503
        %v2507 = vclz %v2506
        %v2508 = vsub.s32 %v2507, 2
        %vm2509 = vcmp.gt.s32.totalorder 0, %v2508
        %v2510 = vsel %vm2509, 0, %v2508
        %v2511 = vsub.s32 32, %v2510
        %v2512 = vshll.u32 %v2503, %v2510
        %v2513 = vshrl.u32 %v2495, %v2511
        %v2514 = vor.u32 %v2512, %v2513
        %v2515 = vsub.s32 4294967266, %v2510
        %v2516 = vadd.s32 %v2515, 127
        %v2517 = vshll.u32 %v2516, 23
        %v2518 = vor.u32 4788187, %v2517
        %v2519 = vand.u32 2147483647, %v2518
        %v2521 = vcvt.s32.f32 %v2514
        %v2522 = vmul.f32 %v2521, %v2519
        %v2523 = vxor.u32 %v2522, 2147483648
        %v2524 = vsel %vm2441, %v2523, %v2522
        %v2525 = vsub.s32 4, %v2501
        %v2526 = vsel %vm2441, %v2525, %v2501
        %v2527 = vsel %vm2440, %v2129, %v2524
        %v2528 = vsel %vm2440, 0, %v2526
        %v2529 = vcosq.f32.pop %v2527
        %v2530 = vsinq.f32.pop %v2527
        %vm2531 = vweird.f32 %v2129
        %v2532 = vand.u32 %v2528, 3
        %vm2533 = vcmp.lt.s32.totalorder %v2532, 2
        %vm2534 = vcmp.eq.s32.totalorder %v2532, 0
        %v2535 = vxor.u32 %v2530, 2147483648
        %v2536 = vsel %vm2534, %v2529, %v2535
        %vm2537 = vcmp.eq.s32.totalorder %v2532, 2
        %v2538 = vxor.u32 %v2529, 2147483648
        %v2539 = vsel %vm2537, %v2538, %v2530
        %v2540 = vsel %vm2533, %v2536, %v2539
        %v2541 = vsel %vm2531, nan, %v2540
        %v2542 = vmul.f32 %v1670, %v2232
        %v2543 = vmul.f32 %v1671, %v2335
        %v2544 = vmul.f32 %v1672, %v2438
        %v2545 = vmul.f32 %v1673, %v2541
        %v2546 = vsub.f32 1.0, %v1670
        %v2547 = vsub.f32 1.0, %v1671
        %v2548 = vsub.f32 1.0, %v1672
        %v2549 = vsub.f32 1.0, %v1673
        %v2550 = vmul.f32 %v2546, %v2126
        %v2551 = vmul.f32 %v2547, %v2127
        %v2552 = vmul.f32 %v2548, %v2128
        %v2553 = vmul.f32 %v2549, %v2129
        %v2554 = vadd.f32 %v2542, %v2550
        %v2555 = vadd.f32 %v2543, %v2551
        %v2556 = vadd.f32 %v2544, %v2552
        %v2557 = vadd.f32 %v2545, %v2553
        %v2558 = vand.u32 2147483647, %v2554
        %v2559 = vand.u32 2147483647, %v2555
        %v2560 = vand.u32 2147483647, %v2556
        %v2561 = vand.u32 2147483647, %v2557
        %v2562 = vadd.f32 %v2558, 1e-10
        %v2563 = vadd.f32 %v2559, 1e-10
        %v2564 = vadd.f32 %v2560, 1e-10
        %v2565 = vadd.f32 %v2561, 1e-10
        %v2566 = vlog2.pop %v2562
        %v2567 = vmul.f32 %v2566, 0.6931472
        %v2568 = vlog2.pop %v2563
        %v2569 = vmul.f32 %v2568, 0.6931472
        %v2570 = vlog2.pop %v2564
        %v2571 = vmul.f32 %v2570, 0.6931472
        %v2572 = vlog2.pop %v2565
        %v2573 = vmul.f32 %v2572, 0.6931472
        %v2574 = vld [vmem:[#allocation5 + $0x140] sm:$0xff]
        %v2575 = vld [vmem:[#allocation5 + $0x148] sm:$0xff]
        %v2576 = vld [vmem:[#allocation5 + $0x150] sm:$0xff]
        %v2577 = vld [vmem:[#allocation5 + $0x158] sm:$0xff]
        %v2578 = vld [vmem:[#allocation5 + $0x160] sm:$0xff]
        %v2580 = vsel %vm1400, %v2574, 0
        %v2583 = vsel %vm1400, %v2575, 0
        %v2586 = vsel %vm1400, %v2576, 0
        %v2589 = vsel %vm1400, %v2577, 0
        %v2592 = vsel %vm1400, %v2578, 0
        %2594 = vmatprep.subr.mxu0 0.0
        %2595 = vmatpush1.msra.mxu0 %v2554
        %2596 = vmatprep.subr.mxu0 0.0
        %2597 = vmatpush1.msra.mxu0 %v2555
        %2598 = vmatprep.subr.mxu0 0.0
        %2599 = vmatpush1.msra.mxu0 %v2556
        %2600 = vmatprep.subr.mxu0 0.0
        %2601 = vmatpush1.msra.mxu0 %v2557
        %2602 = vmatprep.subr.mxu0 0.0
        %2603 = vmatpush1.msra.mxu0 %v2567
        %2604 = vmatprep.subr.mxu0 0.0
        %2605 = vmatpush1.msra.mxu0 %v2569
        %2606 = vmatprep.subr.mxu0 0.0
        %2607 = vmatpush1.msra.mxu0 %v2571
        %2608 = vmatprep.subr.mxu0 0.0
        %2609 = vmatpush1.msra.mxu0 %v2573
        %2610 = vmatprep.subr.mxu0 0.0
        %2611 = vmatpush1.msra.mxu0 0.0
        %2612 = vmatprep.subr.mxu0 0.0
        %2613 = vmatpush1.msra.mxu0 0.0
        %2614 = vmatprep.subr.mxu0 0.0
        %2615 = vmatpush1.msra.mxu0 0.0
        %2616 = vmatprep.subr.mxu0 0.0
        %2617 = vmatpush1.msra.mxu0 0.0
        %2618 = vmatprep.subr.mxu0 0.0
        %2619 = vmatpush1.msra.mxu0 0.0
        %2620 = vmatprep.subr.mxu0 0.0
        %2621 = vmatpush1.msra.mxu0 0.0
        %2622 = vmatprep.subr.mxu0 0.0
        %2623 = vmatpush1.msra.mxu0 0.0
        %2624 = vmatprep.subr.mxu0 0.0
        %2625 = vmatpush1.msra.mxu0 0.0
        %2626 = vmatprep.subr.mxu0 0.0
        %2627 = vmatpush1.msra.mxu0 0.0
        %2628 = vmatprep.subr.mxu0 0.0
        %2629 = vmatpush1.msra.mxu0 0.0
        %2630 = vmatprep.subr.mxu0 0.0
        %2631 = vmatpush1.msra.mxu0 0.0
        %2632 = vmatprep.subr.mxu0 0.0
        %2633 = vmatpush1.msra.mxu0 0.0
        %2634 = vmatprep.subr.mxu0 0.0
        %2635 = vmatpush1.msra.mxu0 0.0
        %2636 = vmatprep.subr.mxu0 0.0
        %2637 = vmatpush1.msra.mxu0 0.0
        %2638 = vmatprep.subr.mxu0 0.0
        %2639 = vmatpush1.msra.mxu0 0.0
        %2640 = vmatprep.subr.mxu0 0.0
        %2641 = vmatpush1.msra.mxu0 0.0
        %2642 = vmatprep.subr.mxu0 0.0
        %2643 = vmatpush1.msra.mxu0 0.0
        %2644 = vmatprep.subr.mxu0 0.0
        %2645 = vmatpush1.msra.mxu0 0.0
        %2646 = vmatprep.subr.mxu0 0.0
        %2647 = vmatpush1.msra.mxu0 0.0
        %2648 = vmatprep.subr.mxu0 0.0
        %2649 = vmatpush1.msra.mxu0 0.0
        %2650 = vmatprep.subr.mxu0 0.0
        %2651 = vmatpush1.msra.mxu0 0.0
        %2652 = vmatprep.subr.mxu0 0.0
        %2653 = vmatpush1.msra.mxu0 0.0
        %2654 = vmatprep.subr.mxu0 0.0
        %2655 = vmatpush1.msra.mxu0 0.0
        %2656 = vmatprep.subr.mxu0 0.0
        %2657 = vmatpush1.msra.mxu0 0.0
        %2658 = vmatprep.mubr.f32.mxu0 0.0
        %2659 = vmatmul.mubr.f32.gmra.mrb[0].mxu0 %v2580
        %v2660 = vpop.f32.mrb[0].mxu0
        %v2661 = vadd.f32 0.0, %v2660
        %v2662 = vpop.f32.mrb[0].mxu0
        %2663 = vmatprep.mubr.f32.mxu0 0.0
        %2664 = vmatmul.mubr.f32.gmra.mrb[0].mxu0 %v2583
        %v2665 = vpop.f32.mrb[0].mxu0
        %v2666 = vadd.f32 0.0, %v2665
        %v2667 = vpop.f32.mrb[0].mxu0
        %2668 = vmatprep.mubr.f32.mxu0 0.0
        %2669 = vmatmul.mubr.f32.gmra.mrb[0].mxu0 %v2586
        %v2670 = vpop.f32.mrb[0].mxu0
        %v2671 = vadd.f32 0.0, %v2670
        %v2672 = vpop.f32.mrb[0].mxu0
        %2673 = vmatprep.mubr.f32.mxu0 0.0
        %2674 = vmatmul.mubr.f32.gmra.mrb[0].mxu0 %v2589
        %v2675 = vpop.f32.mrb[0].mxu0
        %v2676 = vadd.f32 0.0, %v2675
        %v2677 = vpop.f32.mrb[0].mxu0
        %2678 = vmatprep.mubr.f32.mxu0 0.0
        %2679 = vmatmul.mubr.f32.gmra.mrb[0].mxu0 %v2592
        %v2680 = vpop.f32.mrb[0].mxu0
        %v2681 = vadd.f32 0.0, %v2680
        %v2682 = vpop.f32.mrb[0].mxu0
        %2683 = vdwg.mxu0
        %v2684 = vmul.f32 %v2666, 0.5
        %v2685 = vtanh.pop %v2684
        %v2686 = vadd.f32 %v2685, 1.0
        %v2687 = vmul.f32 %v2686, 0.5
        %v2688 = vmul.f32 %v2671, 0.5
        %v2689 = vtanh.pop %v2688
        %v2690 = vadd.f32 %v2689, 1.0
        %v2691 = vmul.f32 %v2690, 0.5
        %v2692 = vmul.f32 %v2676, 0.5
        %v2693 = vtanh.pop %v2692
        %v2694 = vadd.f32 %v2693, 1.0
        %v2695 = vmul.f32 %v2694, 0.5
        %v2696 = vmul.f32 %v2681, 1.442695
        %v2697 = vpow.pop %v2696
        %v2698 = vmul.f32 %v2687, %v2661
        %v2699 = vsub.f32 1.0, %v2687
        %v2700 = vmul.f32 %v2699, %v2697
        %v2701 = vadd.f32 %v2698, %v2700
        %v2702 = vand.u32 2147483647, %v2701
        %vm2703 = vcmp.le.f32.partialorder %v2702, 0.7853982
        %vm2704 = vcmp.lt.s32.totalorder %v2701, 0
        %v2705 = vand.u32 %v2701, 2139095040
        %v2706 = vshrl.u32 %v2705, 23
        %v2707 = vsub.s32 %v2706, 127
        %v2708 = vand.u32 2147483647, %v2701
        %v2709 = vand.u32 %v2708, 8388607
        %v2710 = vor.u32 %v2709, 8388608
        %v2711 = vsub.s32 0, %v2710
        %v2712 = vadd.s32 %v2707, 1
        %vm2713 = vcmp.gt.s32.totalorder %v2712, 0
        %v2714 = vsel %vm2713, %v2712, 0
        %v2715 = vshrl.u32 %v2714, 5
        %v2716 = vand.u32 %v2714, 31
        %v2717 = vsub.s32 32, %v2716
        %v2718 = vshrl.u32 683565275, %v2717
        %v2719 = vshll.u32 683565275, %v2716
        %v2720 = vshrl.u32 2475754826, %v2717
        %v2721 = vor.u32 %v2719, %v2720
        %v2722 = vshll.u32 2475754826, %v2716
        %v2723 = vshrl.u32 2131351028, %v2717
        %v2724 = vor.u32 %v2722, %v2723
        %v2725 = vshll.u32 2131351028, %v2716
        %v2726 = vshrl.u32 2102212464, %v2717
        %v2727 = vor.u32 %v2725, %v2726
        %v2728 = vshll.u32 2102212464, %v2716
        %v2729 = vshrl.u32 920167782, %v2717
        %v2730 = vor.u32 %v2728, %v2729
        %v2731 = vshll.u32 920167782, %v2716
        %v2732 = vshrl.u32 1326507024, %v2717
        %v2733 = vor.u32 %v2731, %v2732
        %vm2734 = vcmp.lt.s32.totalorder %v2715, 1
        %vm2735 = vcmp.lt.s32.totalorder %v2715, 2
        %vm2736 = vcmp.lt.s32.totalorder %v2715, 3
        %vm2737 = vcmp.lt.s32.totalorder %v2715, 4
        %v2738 = vsel %vm2734, %v2718, %v2721
        %v2739 = vsel %vm2737, %v2727, 2102212464
        %v2740 = vsel %vm2736, %v2724, %v2739
        %v2741 = vsel %vm2735, %v2738, %v2740
        %v2742 = vsel %vm2734, %v2721, %v2724
        %v2743 = vsel %vm2737, %v2730, 920167782
        %v2744 = vsel %vm2736, %v2727, %v2743
        %v2745 = vsel %vm2735, %v2742, %v2744
        %v2746 = vsel %vm2734, %v2724, %v2727
        %v2747 = vsel %vm2737, %v2733, 1326507024
        %v2748 = vsel %vm2736, %v2730, %v2747
        %v2749 = vsel %vm2735, %v2746, %v2748
        %v2750 = vshll.u32 %v2710, 8
        %v2751 = vmul.u32.u64.compose %v2750, %v2749
        %v2752 = vextract.low.u32 %v2751
        %v2753 = vextract.high.u32 %v2751
        %v2754 = vmul.u32.u64.compose %v2750, %v2745
        %v2755 = vextract.low.u32 %v2754
        %v2756 = vextract.high.u32 %v2754
        %v2757 = vmul.u32 %v2750, %v2741
        %v2758 = vadd.s32 %v2753, %v2755
        %vm2759 = vc.u32 %v2753, %v2755
        %v2760 = vadd.s32 %v2756, 1
        %v2761 = vsel %vm2759, %v2760, %v2756
        %v2762 = vadd.s32 %v2757, %v2761
        %v2763 = vadd.s32 %v2762, 536870912
        %v2764 = vshrl.u32 %v2763, 30
        %v2765 = vshll.u32 %v2764, 30
        %v2766 = vsub.s32 %v2762, %v2765
        %vm2767 = vcmp.lt.s32.totalorder %v2766, 0
        %v2768 = vsub.s32 0, %v2766
        %v2769 = vsel %vm2767, %v2768, %v2766
        %v2770 = vclz %v2769
        %v2771 = vsub.s32 %v2770, 2
        %vm2772 = vcmp.gt.s32.totalorder 0, %v2771
        %v2773 = vsel %vm2772, 0, %v2771
        %v2774 = vsub.s32 32, %v2773
        %v2775 = vshll.u32 %v2766, %v2773
        %v2776 = vshrl.u32 %v2758, %v2774
        %v2777 = vor.u32 %v2775, %v2776
        %v2778 = vsub.s32 4294967266, %v2773
        %v2779 = vadd.s32 %v2778, 127
        %v2780 = vshll.u32 %v2779, 23
        %v2781 = vor.u32 4788187, %v2780
        %v2782 = vand.u32 2147483647, %v2781
        %v2784 = vcvt.s32.f32 %v2777
        %v2785 = vmul.f32 %v2784, %v2782
        %v2786 = vxor.u32 %v2785, 2147483648
        %v2787 = vsel %vm2704, %v2786, %v2785
        %v2788 = vsub.s32 4, %v2764
        %v2789 = vsel %vm2704, %v2788, %v2764
        %v2790 = vsel %vm2703, %v2701, %v2787
        %v2791 = vsel %vm2703, 0, %v2789
        %v2792 = vcosq.f32.pop %v2790
        %v2793 = vsinq.f32.pop %v2790
        %vm2794 = vweird.f32 %v2701
        %v2795 = vadd.s32 %v2791, 3
        %v2796 = vand.u32 %v2795, 3
        %vm2797 = vcmp.lt.s32.totalorder %v2796, 2
        %vm2798 = vcmp.eq.s32.totalorder %v2796, 0
        %v2799 = vxor.u32 %v2793, 2147483648
        %v2800 = vsel %vm2798, %v2792, %v2799
        %vm2801 = vcmp.eq.s32.totalorder %v2796, 2
        %v2802 = vxor.u32 %v2792, 2147483648
        %v2803 = vsel %vm2801, %v2802, %v2793
        %v2804 = vsel %vm2797, %v2800, %v2803
        %v2805 = vsel %vm2794, nan, %v2804
        %v2806 = vmul.f32 %v2691, %v2805
        %v2807 = vsub.f32 1.0, %v2691
        %v2808 = vmul.f32 %v2807, %v2701
        %v2809 = vadd.f32 %v2806, %v2808
        %v2810 = vand.u32 2147483647, %v2809
        %vm2811 = vcmp.le.f32.partialorder %v2810, 0.7853982
        %vm2812 = vcmp.lt.s32.totalorder %v2809, 0
        %v2813 = vand.u32 %v2809, 2139095040
        %v2814 = vshrl.u32 %v2813, 23
        %v2815 = vsub.s32 %v2814, 127
        %v2816 = vand.u32 2147483647, %v2809
        %v2817 = vand.u32 %v2816, 8388607
        %v2818 = vor.u32 %v2817, 8388608
        %v2819 = vsub.s32 0, %v2818
        %v2820 = vadd.s32 %v2815, 1
        %vm2821 = vcmp.gt.s32.totalorder %v2820, 0
        %v2822 = vsel %vm2821, %v2820, 0
        %v2823 = vshrl.u32 %v2822, 5
        %v2824 = vand.u32 %v2822, 31
        %v2825 = vsub.s32 32, %v2824
        %v2826 = vshrl.u32 683565275, %v2825
        %v2827 = vshll.u32 683565275, %v2824
        %v2828 = vshrl.u32 2475754826, %v2825
        %v2829 = vor.u32 %v2827, %v2828
        %v2830 = vshll.u32 2475754826, %v2824
        %v2831 = vshrl.u32 2131351028, %v2825
        %v2832 = vor.u32 %v2830, %v2831
        %v2833 = vshll.u32 2131351028, %v2824
        %v2834 = vshrl.u32 2102212464, %v2825
        %v2835 = vor.u32 %v2833, %v2834
        %v2836 = vshll.u32 2102212464, %v2824
        %v2837 = vshrl.u32 920167782, %v2825
        %v2838 = vor.u32 %v2836, %v2837
        %v2839 = vshll.u32 920167782, %v2824
        %v2840 = vshrl.u32 1326507024, %v2825
        %v2841 = vor.u32 %v2839, %v2840
        %vm2842 = vcmp.lt.s32.totalorder %v2823, 1
        %vm2843 = vcmp.lt.s32.totalorder %v2823, 2
        %vm2844 = vcmp.lt.s32.totalorder %v2823, 3
        %vm2845 = vcmp.lt.s32.totalorder %v2823, 4
        %v2846 = vsel %vm2842, %v2826, %v2829
        %v2847 = vsel %vm2845, %v2835, 2102212464
        %v2848 = vsel %vm2844, %v2832, %v2847
        %v2849 = vsel %vm2843, %v2846, %v2848
        %v2850 = vsel %vm2842, %v2829, %v2832
        %v2851 = vsel %vm2845, %v2838, 920167782
        %v2852 = vsel %vm2844, %v2835, %v2851
        %v2853 = vsel %vm2843, %v2850, %v2852
        %v2854 = vsel %vm2842, %v2832, %v2835
        %v2855 = vsel %vm2845, %v2841, 1326507024
        %v2856 = vsel %vm2844, %v2838, %v2855
        %v2857 = vsel %vm2843, %v2854, %v2856
        %v2858 = vshll.u32 %v2818, 8
        %v2859 = vmul.u32.u64.compose %v2858, %v2857
        %v2860 = vextract.low.u32 %v2859
        %v2861 = vextract.high.u32 %v2859
        %v2862 = vmul.u32.u64.compose %v2858, %v2853
        %v2863 = vextract.low.u32 %v2862
        %v2864 = vextract.high.u32 %v2862
        %v2865 = vmul.u32 %v2858, %v2849
        %v2866 = vadd.s32 %v2861, %v2863
        %vm2867 = vc.u32 %v2861, %v2863
        %v2868 = vadd.s32 %v2864, 1
        %v2869 = vsel %vm2867, %v2868, %v2864
        %v2870 = vadd.s32 %v2865, %v2869
        %v2871 = vadd.s32 %v2870, 536870912
        %v2872 = vshrl.u32 %v2871, 30
        %v2873 = vshll.u32 %v2872, 30
        %v2874 = vsub.s32 %v2870, %v2873
        %vm2875 = vcmp.lt.s32.totalorder %v2874, 0
        %v2876 = vsub.s32 0, %v2874
        %v2877 = vsel %vm2875, %v2876, %v2874
        %v2878 = vclz %v2877
        %v2879 = vsub.s32 %v2878, 2
        %vm2880 = vcmp.gt.s32.totalorder 0, %v2879
        %v2881 = vsel %vm2880, 0, %v2879
        %v2882 = vsub.s32 32, %v2881
        %v2883 = vshll.u32 %v2874, %v2881
        %v2884 = vshrl.u32 %v2866, %v2882
        %v2885 = vor.u32 %v2883, %v2884
        %v2886 = vsub.s32 4294967266, %v2881
        %v2887 = vadd.s32 %v2886, 127
        %v2888 = vshll.u32 %v2887, 23
        %v2889 = vor.u32 4788187, %v2888
        %v2890 = vand.u32 2147483647, %v2889
        %v2892 = vcvt.s32.f32 %v2885
        %v2893 = vmul.f32 %v2892, %v2890
        %v2894 = vxor.u32 %v2893, 2147483648
        %v2895 = vsel %vm2812, %v2894, %v2893
        %v2896 = vsub.s32 4, %v2872
        %v2897 = vsel %vm2812, %v2896, %v2872
        %v2898 = vsel %vm2811, %v2809, %v2895
        %v2899 = vsel %vm2811, 0, %v2897
        %v2900 = vcosq.f32.pop %v2898
        %v2901 = vsinq.f32.pop %v2898
        %vm2902 = vweird.f32 %v2809
        %v2903 = vand.u32 %v2899, 3
        %vm2904 = vcmp.lt.s32.totalorder %v2903, 2
        %vm2905 = vcmp.eq.s32.totalorder %v2903, 0
        %v2906 = vxor.u32 %v2901, 2147483648
        %v2907 = vsel %vm2905, %v2900, %v2906
        %vm2908 = vcmp.eq.s32.totalorder %v2903, 2
        %v2909 = vxor.u32 %v2900, 2147483648
        %v2910 = vsel %vm2908, %v2909, %v2901
        %v2911 = vsel %vm2904, %v2907, %v2910
        %v2912 = vsel %vm2902, nan, %v2911
        %v2913 = vmul.f32 %v2695, %v2912
        %v2914 = vsub.f32 1.0, %v2695
        %v2915 = vmul.f32 %v2914, %v2809
        %v2916 = vadd.f32 %v2913, %v2915
        %2917 = vst [vmem:[%s175] sm:$0xff] %v2916
        %s2918 = sand.u32 %s75, 1
        %s2919 = scalar_lea.sflag [#allocation4], %s2918
        %s2920 = sand.u32 %s75, 1
        %s2921 = smul.addr %s2920, 8
        %s2922 = scalar_lea.vmem [#allocation7], %s2921
        // Predicated region
        $region37: #{tpu_custom_call.1} parent=27 // pred_check
          %p2923 = pneg %p85
        $region38: #{tpu_custom_call.1} parent=27 // pred_check_branch
          %2925 = sbr.rel (%p2923) target = $region40
        $region39: #{tpu_custom_call.1} parent=27 // pred_region
          %s2927 = ssub.s32 128, 128
          %2928 = vsyncadd %s2919, %s2927
          %s2929 = smul.addr %s20, 128
          %s2930 = scalar_lea.hbm %s2, %s2929
          %s2932 = sshll.u32 %s2922, 4
          %s2933 = int_to_ptr.vmem [resolvable:$true] %s2932
          %2935 = dma.vmem_to_hbm [thread:$0]  %s2933, 128, %s2930, %s2919
        $region40: #{tpu_custom_call.1} parent=27 // pred_fallthru
          _
      $region28: #{tpu_custom_call.1} parent=5 // pred_fallthru
        _
      %p2936 = scmp.le.s32.totalorder 2, %s15
      // Predicated region
      $region41: #{tpu_custom_call.1} parent=5 // pred_check
        %p2937 = pneg %p2936
      $region42: #{tpu_custom_call.1} parent=5 // pred_check_branch
        %2939 = sbr.rel (%p2937) target = $region44
      $region43: #{tpu_custom_call.1} parent=5 // pred_region
        %s2940 = ssub.s32 %s15, 2
        // Predicated region
        $region45: #{tpu_custom_call.1} parent=43 // pred_check
          %p2941 = pneg %p91
        $region46: #{tpu_custom_call.1} parent=43 // pred_check_branch
          %2943 = sbr.rel (%p2941) target = $region48
        $region47: #{tpu_custom_call.1} parent=43 // pred_region
          %s2944 = sand.u32 %s76, 1
          %s2945 = scalar_lea.sflag [#allocation4], %s2944
          %s2946 = sand.u32 %s76, 1
          %s2947 = smul.addr %s2946, 8
          %s2948 = scalar_lea.vmem [#allocation7], %s2947
          %2949 = dma.done %s2945, 128
        $region48: #{tpu_custom_call.1} parent=43 // pred_fallthru
          _
      $region44: #{tpu_custom_call.1} parent=5 // pred_fallthru
        _
    $region6: #{tpu_custom_call.1} parent=1 // loop_footer
      %s19 = sadd.s32 1, %s15
    $region7: #{tpu_custom_call.1} parent=1 // loop_footer_branch
      %14 = sbr.rel target = $region3
    $region8: #{tpu_custom_call.1} parent=1 // loop_exit
      _
    %2950 = vsyncpa [#allocation3], 1
    %s2951 = scalar_lea.sflag [#allocation3], 1
    %2952 = vsyncpa %s2951, 1
    %2953 = vsyncpa [#allocation6], 1
    %2954 = vsyncpa [#allocation4], 1
    %s2955 = scalar_lea.sflag [#allocation4], 1
    %2956 = vsyncpa %s2955, 1

</llo_original>
